<compile_context>
chip_gen: v5e
topology: v5e:2x2
jax: 0.10.0
libtpu: 0.0.40
codegen_flags: <defaults>
</compile_context>

<pallas_src>
import math

import jax
import jax.numpy as jnp
from jax.experimental import pallas as pl
from jax.experimental.pallas import tpu as pltpu

LANES = 128
MAX_BLOCK_ROWS = 8192        # (8192, 128) f32 = 4 MiB per buffer slot
SMALL_THRESHOLD = 1 << 16    # below this many elements plain jnp (XLA) wins

_KIND_LOG = 0                # sum(log(a))
_KIND_SSD = 1                # sum((a - b)^2)


def _jnp_reduce(kind, arrays, scale):
    """Plain-JAX partial sum for small tensors and ragged (<128) tails."""
    if kind == _KIND_LOG:
        return scale * jnp.sum(jnp.log(arrays[0].astype(jnp.float32)))
    d = arrays[0].astype(jnp.float32) - arrays[1].astype(jnp.float32)
    return scale * jnp.sum(d * d)


def _make_fused_kernel(n_a, n_b, num_chunks, block_rows, has_log, has_ssd):
    sub = block_rows // 8

    def kernel(*args):
        # scalar-prefetch schedule (SMEM)
        kind_s, aid_s, bid_s, row_s, skip_s, scale_s = args[:6]
        pos = 6
        a_refs = args[pos:pos + n_a]; pos += n_a          # HBM (pl.ANY)
        b_refs = args[pos:pos + n_b]; pos += n_b          # HBM (pl.ANY)
        out_bpp, out_mse = args[pos], args[pos + 1]; pos += 2
        bufa, sema = args[pos], args[pos + 1]; pos += 2
        if n_b:
            bufb, semb = args[pos], args[pos + 1]; pos += 2
        acc_bpp, acc_mse = args[pos], args[pos + 1]

        i = pl.program_id(0)
        slot = i & 1

        def start_fetch(c, s):
            a_id = aid_s[c]
            row = row_s[c]
            for t in range(n_a):
                @pl.when(a_id == t)
                def _(t=t):
                    pltpu.make_async_copy(
                        a_refs[t].at[pl.ds(row, block_rows)],
                        bufa.at[s], sema.at[s]).start()
            if n_b:
                b_id = bid_s[c]
                is_ssd = kind_s[c] == _KIND_SSD
                for t in range(n_b):
                    @pl.when(jnp.logical_and(is_ssd, b_id == t))
                    def _(t=t):
                        pltpu.make_async_copy(
                            b_refs[t].at[pl.ds(row, block_rows)],
                            bufb.at[s], semb.at[s]).start()

        def wait_fetch(kind_c, s):
            # dummy src refs only fix the descriptor shape/byte-count
            pltpu.make_async_copy(
                a_refs[0].at[pl.ds(0, block_rows)], bufa.at[s],
                sema.at[s]).wait()
            if n_b:
                @pl.when(kind_c == _KIND_SSD)
                def _():
                    pltpu.make_async_copy(
                        b_refs[0].at[pl.ds(0, block_rows)], bufb.at[s],
                        semb.at[s]).wait()

        # read schedule scalars before any DMA wait (SMEM forwarding)
        kind_i = kind_s[i]
        skip_i = skip_s[i]
        scale_i = scale_s[i]

        @pl.when(i == 0)
        def _():
            acc_bpp[...] = jnp.zeros_like(acc_bpp)
            acc_mse[...] = jnp.zeros_like(acc_mse)
            start_fetch(0, 0)

        @pl.when(i + 1 < num_chunks)
        def _():
            c = jnp.minimum(i + 1, num_chunks - 1)
            start_fetch(c, 1 - slot)

        wait_fetch(kind_i, slot)

        a = bufa[slot].astype(jnp.float32)

        def accum(acc_ref, vals):
            # interior chunks: unmasked pure-VPU accumulation
            @pl.when(skip_i == 0)
            def _():
                acc_ref[...] += scale_i * vals.reshape(sub, 8, LANES).sum(axis=0)

            # single clamped edge chunk per tensor: mask already-counted rows
            @pl.when(skip_i > 0)
            def _():
                rid = jax.lax.broadcasted_iota(jnp.int32, (block_rows, LANES), 0)
                vm = jnp.where(rid >= skip_i, vals, 0.0)
                acc_ref[...] += scale_i * vm.reshape(sub, 8, LANES).sum(axis=0)

        if has_log:
            @pl.when(kind_i == _KIND_LOG)
            def _():
                accum(acc_bpp, jnp.log(a))

        if has_ssd and n_b:
            @pl.when(kind_i == _KIND_SSD)
            def _():
                d = a - bufb[slot].astype(jnp.float32)
                accum(acc_mse, d * d)

        @pl.when(i == num_chunks - 1)
        def _():
            out_bpp[...] = jnp.zeros_like(out_bpp) + jnp.sum(acc_bpp[...])
            out_mse[...] = jnp.zeros_like(out_mse) + jnp.sum(acc_mse[...])

    return kernel


def _fused_reduce(jobs):
    """One streaming pallas_call over all large reduction jobs.

    jobs: list of (kind, [2-D (rows,128) arrays], rows, scale)."""
    a_arrays, b_arrays, meta = [], [], []
    for kind, mains, rows, scale in jobs:
        a_id = len(a_arrays)
        a_arrays.append(mains[0])
        b_id = 0
        if kind == _KIND_SSD:
            b_id = len(b_arrays)
            b_arrays.append(mains[1])
        meta.append((kind, a_id, b_id, rows, scale))

    def unify(arrs):
        if not arrs:
            return arrs, jnp.dtype(jnp.float32)
        dt = jnp.result_type(*arrs)
        return [x if x.dtype == dt else x.astype(dt) for x in arrs], jnp.dtype(dt)

    a_arrays, a_dt = unify(a_arrays)
    b_arrays, b_dt = unify(b_arrays)

    min_rows = min(rows for _, _, _, rows, _ in meta)
    block_rows = min(MAX_BLOCK_ROWS, min_rows)
    block_rows -= block_rows % 8            # tile-aligned sublane regroup

    kinds, aids, bids, rowoffs, skips, scales = [], [], [], [], [], []
    for kind, a_id, b_id, rows, scale in meta:
        n_chunks = -(-rows // block_rows)
        for c in range(n_chunks):
            off = c * block_rows
            skip = 0
            if off + block_rows > rows:      # clamp the last chunk in-bounds
                skip = off - (rows - block_rows)
                off = rows - block_rows
            kinds.append(kind); aids.append(a_id); bids.append(b_id)
            rowoffs.append(off); skips.append(skip); scales.append(scale)

    num_chunks = len(kinds)
    has_log = any(k == _KIND_LOG for k in kinds)
    has_ssd = any(k == _KIND_SSD for k in kinds)
    n_a, n_b = len(a_arrays), len(b_arrays)

    kernel = _make_fused_kernel(n_a, n_b, num_chunks, block_rows,
                                has_log, has_ssd)

    scratch = [pltpu.VMEM((2, block_rows, LANES), a_dt),
               pltpu.SemaphoreType.DMA((2,))]
    buf_bytes = 2 * block_rows * LANES * a_dt.itemsize
    if n_b:
        scratch += [pltpu.VMEM((2, block_rows, LANES), b_dt),
                    pltpu.SemaphoreType.DMA((2,))]
        buf_bytes += 2 * block_rows * LANES * b_dt.itemsize
    scratch += [pltpu.VMEM((8, LANES), jnp.float32),
                pltpu.VMEM((8, LANES), jnp.float32)]

    log_elems = sum(r * LANES for (k, _, _, r, _) in meta if k == _KIND_LOG)
    ssd_elems = sum(r * LANES for (k, _, _, r, _) in meta if k == _KIND_SSD)
    bytes_accessed = sum(int(x.size) * x.dtype.itemsize
                         for x in (a_arrays + b_arrays)) + 2 * 8 * LANES * 4
    cost = pl.CostEstimate(flops=2 * log_elems + 3 * ssd_elems,
                           transcendentals=log_elems,
                           bytes_accessed=bytes_accessed)

    out_bpp, out_mse = pl.pallas_call(
        kernel,
        out_shape=(jax.ShapeDtypeStruct((8, LANES), jnp.float32),
                   jax.ShapeDtypeStruct((8, LANES), jnp.float32)),
        grid_spec=pltpu.PrefetchScalarGridSpec(
            num_scalar_prefetch=6,
            grid=(num_chunks,),
            in_specs=[pl.BlockSpec(memory_space=pl.ANY)] * (n_a + n_b),
            out_specs=[pl.BlockSpec((8, LANES), lambda i, *_: (0, 0)),
                       pl.BlockSpec((8, LANES), lambda i, *_: (0, 0))],
            scratch_shapes=scratch,
        ),
        compiler_params=pltpu.CompilerParams(
            dimension_semantics=("arbitrary",),
            vmem_limit_bytes=int(max(buf_bytes + (4 << 20), 32 << 20))),
        cost_estimate=cost,
    )(jnp.asarray(kinds, jnp.int32), jnp.asarray(aids, jnp.int32),
      jnp.asarray(bids, jnp.int32), jnp.asarray(rowoffs, jnp.int32),
      jnp.asarray(skips, jnp.int32), jnp.asarray(scales, jnp.float32),
      *a_arrays, *b_arrays)

    return out_bpp[0, 0], out_mse[0, 0]


# ---------------------------------------------------------------------------
# Forward pass (mirrors FusionRDLoss.forward)
# ---------------------------------------------------------------------------
def fusion_rd_loss(output, target, lmbda=0.01):
    num_pixels = 0
    for p in target:
        N, _, H, W = p.shape
        num_pixels += N * H * W
    bpp_scale = 1.0 / (-math.log(2) * num_pixels)

    small_bpp, small_mse, jobs = [], [], []

    def add_task(kind, arrays, scale, small_terms):
        numel = int(arrays[0].size)
        if numel == 0:
            return
        if numel < SMALL_THRESHOLD:          # tiny tensor: XLA fast path
            small_terms.append(_jnp_reduce(kind, arrays, scale))
            return
        rows = numel // LANES
        aligned = rows * LANES
        flats = [x.reshape(-1) for x in arrays]
        if aligned < numel:                  # <128-element ragged tail -> jnp
            small_terms.append(
                _jnp_reduce(kind, [f[aligned:] for f in flats], scale))
        jobs.append((kind,
                     [f[:aligned].reshape(rows, LANES) for f in flats],
                     rows, scale))

    for likelihoods in output['likelihoods'].values():
        add_task(_KIND_LOG, [likelihoods], bpp_scale, small_bpp)
    for k in range(4):                       # nn.MSELoss() per level, summed
        f, t = output['features'][k], target[k]
        add_task(_KIND_SSD, [f, t], 1.0 / int(f.size), small_mse)

    bpp_loss = jnp.float32(0.0)
    for term in small_bpp:
        bpp_loss = bpp_loss + term
    mse_loss = jnp.float32(0.0)
    for term in small_mse:
        mse_loss = mse_loss + term

    if jobs:
        kb, km = _fused_reduce(jobs)
        bpp_loss = bpp_loss + kb
        mse_loss = mse_loss + km

    out = {'bpp_loss': bpp_loss, 'mse_loss': mse_loss}
    out['loss'] = lmbda * (255 ** 2) * mse_loss + bpp_loss
    return out


# ---------------------------------------------------------------------------
# Pure-JAX reference (sanity check only)
# ---------------------------------------------------------------------------
def _reference(output, target, lmbda=0.01):
    num_pixels = sum(p.shape[0] * p.shape[2] * p.shape[3] for p in target)
    bpp = sum(jnp.sum(jnp.log(l)) / (-math.log(2) * num_pixels)
              for l in output['likelihoods'].values())
    mse = sum(jnp.mean(jnp.square(output['features'][k] - target[k]))
              for k in range(4))
    return bpp, mse, lmbda * 255 ** 2 * mse + bpp


if __name__ == "__main__":
    root = jax.random.PRNGKey(0)

    def build_inputs(key, feat_shapes, lik_shapes):
        n_f = len(feat_shapes)
        ks = jax.random.split(key, 2 * n_f + len(lik_shapes))
        target = [jax.random.normal(ks[i], s, dtype=jnp.float32)
                  for i, s in enumerate(feat_shapes)]
        features = [target[i] + 0.5 * jax.random.normal(ks[n_f + i], s,
                                                        dtype=jnp.float32)
                    for i, s in enumerate(feat_shapes)]
        likelihoods = {}
        for j, s in enumerate(lik_shapes):
            u = jax.nn.sigmoid(jax.random.normal(ks[2 * n_f + j], s,
                                                 dtype=jnp.float32))
            likelihoods[f"l{j}"] = u * 0.99 + 0.005      # values in (0, 1)
        return {'features': features, 'likelihoods': likelihoods}, target

    # 1) Small FPN-like pyramid (spec-implied shapes) -> plain-jnp fast path.
    small_feats = [(2, 4, 16, 16), (2, 4, 8, 8), (2, 4, 4, 4), (2, 4, 2, 2)]
    small_liks = [(2, 8, 4, 4), (2, 8, 2, 2)]
    out_s, tgt_s = build_inputs(jax.random.fold_in(root, 0),
                                small_feats, small_liks)
    res_s = fusion_rd_loss(out_s, tgt_s)
    jax.block_until_ready(res_s['loss'])
    rb, rm, rl = _reference(out_s, tgt_s)
    assert jnp.allclose(res_s['bpp_loss'], rb, rtol=1e-5, atol=1e-6)
    assert jnp.allclose(res_s['mse_loss'], rm, rtol=1e-5, atol=1e-6)
    assert jnp.allclose(res_s['loss'], rl, rtol=1e-5, atol=1e-4)

    # 2) Medium pyramid -> exercises the fused Pallas kernel: multi-chunk log
    #    job, clamped+masked edge chunk, ragged (<128) tail, and small tensors
    #    mixed in on the jnp fast path.
    med_feats = [(2, 4, 99, 101), (2, 4, 70, 70), (2, 4, 36, 36), (2, 4, 18, 18)]
    med_liks = [(2, 16, 64, 64), (2, 16, 32, 32)]
    out_m, tgt_m = build_inputs(jax.random.fold_in(root, 1),
                                med_feats, med_liks)
    res_m = fusion_rd_loss(out_m, tgt_m)
    jax.block_until_ready(res_m['loss'])
    rb, rm, rl = _reference(out_m, tgt_m)
    assert jnp.allclose(res_m['bpp_loss'], rb, rtol=1e-4, atol=1e-5)
    assert jnp.allclose(res_m['mse_loss'], rm, rtol=1e-4, atol=1e-5)
    assert jnp.allclose(res_m['loss'], rl, rtol=1e-4, atol=1e-3)

    print("KERNEL_OK")
</pallas_src>

<mosaic_0001>
module attributes {stable_mosaic.version = 11 : i64} {
  func.func @kernel(%arg0: i32, %arg1: memref<3xi32, #tpu.memory_space<smem>>, %arg2: memref<3xi32, #tpu.memory_space<smem>>, %arg3: memref<3xi32, #tpu.memory_space<smem>>, %arg4: memref<3xi32, #tpu.memory_space<smem>>, %arg5: memref<3xi32, #tpu.memory_space<smem>>, %arg6: memref<3xf32, #tpu.memory_space<smem>>, %arg7: memref<1024x128xf32, #tpu.memory_space<any>>, %arg8: memref<624x128xf32, #tpu.memory_space<any>>, %arg9: memref<624x128xf32, #tpu.memory_space<any>>, %arg10: memref<8x128xf32, #tpu.memory_space<vmem>>, %arg11: memref<8x128xf32, #tpu.memory_space<vmem>>, %arg12: memref<2x624x128xf32, #tpu.memory_space<vmem>>, %arg13: memref<2x!tpu.dma_semaphore, #tpu.memory_space<semaphore_mem>>, %arg14: memref<2x624x128xf32, #tpu.memory_space<vmem>>, %arg15: memref<2x!tpu.dma_semaphore, #tpu.memory_space<semaphore_mem>>, %arg16: memref<8x128xf32, #tpu.memory_space<vmem>>, %arg17: memref<8x128xf32, #tpu.memory_space<vmem>>) attributes {dimension_semantics = [#tpu.dimension_semantics<arbitrary>], iteration_bounds = array<i64: 3>, scalar_prefetch = 6 : i64, scratch_operands = 6 : i64, tpu.core_type = #tpu.core_type<tc>, window_params = [{}, {}, {}, {pipeline_mode = #tpu.pipeline_mode<synchronous>, transform_indices = @transform_3, window_bounds = array<i64: 8, 128>}, {pipeline_mode = #tpu.pipeline_mode<synchronous>, transform_indices = @transform_4, window_bounds = array<i64: 8, 128>}]} {
    %c1_i32 = arith.constant 1 : i32
    %0 = arith.andi %arg0, %c1_i32 : i32
    %1 = arith.index_cast %arg0 : i32 to index
    %2 = memref.load %arg1[%1] : memref<3xi32, #tpu.memory_space<smem>>
    %3 = arith.index_cast %arg0 : i32 to index
    %4 = memref.load %arg5[%3] : memref<3xi32, #tpu.memory_space<smem>>
    %5 = arith.index_cast %arg0 : i32 to index
    %6 = memref.load %arg6[%5] : memref<3xf32, #tpu.memory_space<smem>>
    %c0_i32 = arith.constant 0 : i32
    %7 = arith.cmpi eq, %arg0, %c0_i32 : i32
    %8 = arith.extui %7 : i1 to i32
    %c0_i32_0 = arith.constant 0 : i32
    %9 = arith.cmpi ne, %8, %c0_i32_0 : i32
    scf.if %9 {
      %cst = arith.constant 0.000000e+00 : f32
      %34 = vector.broadcast %cst : f32 to vector<8x128xf32>
      %c0_15 = arith.constant 0 : index
      %c0_16 = arith.constant 0 : index
      %35 = vector.load %arg16[%c0_15, %c0_16] : memref<8x128xf32, #tpu.memory_space<vmem>>, vector<8x128xf32>
      tpu.vector_store %arg16[%c0_15, %c0_16], %34 {strides = array<i32>} : memref<8x128xf32, #tpu.memory_space<vmem>>, vector<8x128xf32>,
      %cst_17 = arith.constant 0.000000e+00 : f32
      %36 = vector.broadcast %cst_17 : f32 to vector<8x128xf32>
      %c0_18 = arith.constant 0 : index
      %c0_19 = arith.constant 0 : index
      %37 = vector.load %arg17[%c0_18, %c0_19] : memref<8x128xf32, #tpu.memory_space<vmem>>, vector<8x128xf32>
      tpu.vector_store %arg17[%c0_18, %c0_19], %36 {strides = array<i32>} : memref<8x128xf32, #tpu.memory_space<vmem>>, vector<8x128xf32>,
      %c0_20 = arith.constant 0 : index
      %38 = memref.load %arg2[%c0_20] : memref<3xi32, #tpu.memory_space<smem>>
      %c0_21 = arith.constant 0 : index
      %39 = memref.load %arg4[%c0_21] : memref<3xi32, #tpu.memory_space<smem>>
      %c0_i32_22 = arith.constant 0 : i32
      %40 = arith.cmpi eq, %38, %c0_i32_22 : i32
      %41 = arith.extui %40 : i1 to i32
      %c0_i32_23 = arith.constant 0 : i32
      %42 = arith.cmpi ne, %41, %c0_i32_23 : i32
      scf.if %42 {
        %c0_i32_31 = arith.constant 0 : i32
        %c0_i32_32 = arith.constant 0 : i32
        %c0_i32_33 = arith.constant 0 : i32
        %53 = tpu.memref_slice %arg7[%39, %c0_i32_33] : memref<1024x128xf32, #tpu.memory_space<any>> -> memref<624x128xf32, #tpu.memory_space<any>>
        %c0_i32_34 = arith.constant 0 : i32
        %c0_i32_35 = arith.constant 0 : i32
        %54 = tpu.memref_slice %arg12[%c0_i32_31, %c0_i32_34, %c0_i32_35] : memref<2x624x128xf32, #tpu.memory_space<vmem>> -> memref<1x624x128xf32, #tpu.memory_space<vmem>>
        %55 = tpu.memref_squeeze %54 : memref<1x624x128xf32, #tpu.memory_space<vmem>> -> memref<624x128xf32, #tpu.memory_space<vmem>>
        %56 = tpu.memref_slice %arg13[%c0_i32_32] : memref<2x!tpu.dma_semaphore, #tpu.memory_space<semaphore_mem>> -> memref<1x!tpu.dma_semaphore, #tpu.memory_space<semaphore_mem>>
        %57 = tpu.memref_squeeze %56 : memref<1x!tpu.dma_semaphore, #tpu.memory_space<semaphore_mem>> -> memref<!tpu.dma_semaphore, #tpu.memory_space<semaphore_mem>>
        tpu.enqueue_dma source(%53 : memref<624x128xf32, #tpu.memory_space<any>>) target(%55 : memref<624x128xf32, #tpu.memory_space<vmem>>) target_semaphore(%57 : memref<!tpu.dma_semaphore, #tpu.memory_space<semaphore_mem>>)
      } else {
      }
      %c1_i32_24 = arith.constant 1 : i32
      %43 = arith.cmpi eq, %38, %c1_i32_24 : i32
      %44 = arith.extui %43 : i1 to i32
      %c0_i32_25 = arith.constant 0 : i32
      %45 = arith.cmpi ne, %44, %c0_i32_25 : i32
      scf.if %45 {
        %c0_i32_31 = arith.constant 0 : i32
        %c0_i32_32 = arith.constant 0 : i32
        %c0_i32_33 = arith.constant 0 : i32
        %53 = tpu.memref_slice %arg8[%39, %c0_i32_33] : memref<624x128xf32, #tpu.memory_space<any>> -> memref<624x128xf32, #tpu.memory_space<any>>
        %c0_i32_34 = arith.constant 0 : i32
        %c0_i32_35 = arith.constant 0 : i32
        %54 = tpu.memref_slice %arg12[%c0_i32_31, %c0_i32_34, %c0_i32_35] : memref<2x624x128xf32, #tpu.memory_space<vmem>> -> memref<1x624x128xf32, #tpu.memory_space<vmem>>
        %55 = tpu.memref_squeeze %54 : memref<1x624x128xf32, #tpu.memory_space<vmem>> -> memref<624x128xf32, #tpu.memory_space<vmem>>
        %56 = tpu.memref_slice %arg13[%c0_i32_32] : memref<2x!tpu.dma_semaphore, #tpu.memory_space<semaphore_mem>> -> memref<1x!tpu.dma_semaphore, #tpu.memory_space<semaphore_mem>>
        %57 = tpu.memref_squeeze %56 : memref<1x!tpu.dma_semaphore, #tpu.memory_space<semaphore_mem>> -> memref<!tpu.dma_semaphore, #tpu.memory_space<semaphore_mem>>
        tpu.enqueue_dma source(%53 : memref<624x128xf32, #tpu.memory_space<any>>) target(%55 : memref<624x128xf32, #tpu.memory_space<vmem>>) target_semaphore(%57 : memref<!tpu.dma_semaphore, #tpu.memory_space<semaphore_mem>>)
      } else {
      }
      %c0_26 = arith.constant 0 : index
      %46 = memref.load %arg3[%c0_26] : memref<3xi32, #tpu.memory_space<smem>>
      %c0_27 = arith.constant 0 : index
      %47 = memref.load %arg1[%c0_27] : memref<3xi32, #tpu.memory_space<smem>>
      %c1_i32_28 = arith.constant 1 : i32
      %48 = arith.cmpi eq, %47, %c1_i32_28 : i32
      %c0_i32_29 = arith.constant 0 : i32
      %49 = arith.cmpi eq, %46, %c0_i32_29 : i32
      %50 = arith.andi %48, %49 : i1
      %51 = arith.extui %50 : i1 to i32
      %c0_i32_30 = arith.constant 0 : i32
      %52 = arith.cmpi ne, %51, %c0_i32_30 : i32
      scf.if %52 {
        %c0_i32_31 = arith.constant 0 : i32
        %c0_i32_32 = arith.constant 0 : i32
        %c0_i32_33 = arith.constant 0 : i32
        %53 = tpu.memref_slice %arg9[%39, %c0_i32_33] : memref<624x128xf32, #tpu.memory_space<any>> -> memref<624x128xf32, #tpu.memory_space<any>>
        %c0_i32_34 = arith.constant 0 : i32
        %c0_i32_35 = arith.constant 0 : i32
        %54 = tpu.memref_slice %arg14[%c0_i32_31, %c0_i32_34, %c0_i32_35] : memref<2x624x128xf32, #tpu.memory_space<vmem>> -> memref<1x624x128xf32, #tpu.memory_space<vmem>>
        %55 = tpu.memref_squeeze %54 : memref<1x624x128xf32, #tpu.memory_space<vmem>> -> memref<624x128xf32, #tpu.memory_space<vmem>>
        %56 = tpu.memref_slice %arg15[%c0_i32_32] : memref<2x!tpu.dma_semaphore, #tpu.memory_space<semaphore_mem>> -> memref<1x!tpu.dma_semaphore, #tpu.memory_space<semaphore_mem>>
        %57 = tpu.memref_squeeze %56 : memref<1x!tpu.dma_semaphore, #tpu.memory_space<semaphore_mem>> -> memref<!tpu.dma_semaphore, #tpu.memory_space<semaphore_mem>>
        tpu.enqueue_dma source(%53 : memref<624x128xf32, #tpu.memory_space<any>>) target(%55 : memref<624x128xf32, #tpu.memory_space<vmem>>) target_semaphore(%57 : memref<!tpu.dma_semaphore, #tpu.memory_space<semaphore_mem>>)
      } else {
      }
    } else {
    }
    %c1_i32_1 = arith.constant 1 : i32
    %10 = arith.addi %arg0, %c1_i32_1 : i32
    %c3_i32 = arith.constant 3 : i32
    %11 = arith.cmpi slt, %10, %c3_i32 : i32
    %12 = arith.extui %11 : i1 to i32
    %c0_i32_2 = arith.constant 0 : i32
    %13 = arith.cmpi ne, %12, %c0_i32_2 : i32
    scf.if %13 {
      %c1_i32_15 = arith.constant 1 : i32
      %34 = arith.addi %arg0, %c1_i32_15 : i32
      %c2_i32_16 = arith.constant 2 : i32
      %35 = arith.minsi %34, %c2_i32_16 : i32
      %c1_i32_17 = arith.constant 1 : i32
      %36 = arith.subi %c1_i32_17, %0 : i32
      %37 = arith.index_cast %35 : i32 to index
      %38 = memref.load %arg2[%37] : memref<3xi32, #tpu.memory_space<smem>>
      %39 = arith.index_cast %35 : i32 to index
      %40 = memref.load %arg4[%39] : memref<3xi32, #tpu.memory_space<smem>>
      %c0_i32_18 = arith.constant 0 : i32
      %41 = arith.cmpi eq, %38, %c0_i32_18 : i32
      %42 = arith.extui %41 : i1 to i32
      %c0_i32_19 = arith.constant 0 : i32
      %43 = arith.cmpi ne, %42, %c0_i32_19 : i32
      scf.if %43 {
        %c0_i32_25 = arith.constant 0 : i32
        %56 = tpu.memref_slice %arg7[%40, %c0_i32_25] : memref<1024x128xf32, #tpu.memory_space<any>> -> memref<624x128xf32, #tpu.memory_space<any>>
        %c0_i32_26 = arith.constant 0 : i32
        %c0_i32_27 = arith.constant 0 : i32
        %57 = tpu.memref_slice %arg12[%36, %c0_i32_26, %c0_i32_27] : memref<2x624x128xf32, #tpu.memory_space<vmem>> -> memref<1x624x128xf32, #tpu.memory_space<vmem>>
        %58 = tpu.memref_squeeze %57 : memref<1x624x128xf32, #tpu.memory_space<vmem>> -> memref<624x128xf32, #tpu.memory_space<vmem>>
        %59 = tpu.memref_slice %arg13[%36] : memref<2x!tpu.dma_semaphore, #tpu.memory_space<semaphore_mem>> -> memref<1x!tpu.dma_semaphore, #tpu.memory_space<semaphore_mem>>
        %60 = tpu.memref_squeeze %59 : memref<1x!tpu.dma_semaphore, #tpu.memory_space<semaphore_mem>> -> memref<!tpu.dma_semaphore, #tpu.memory_space<semaphore_mem>>
        tpu.enqueue_dma source(%56 : memref<624x128xf32, #tpu.memory_space<any>>) target(%58 : memref<624x128xf32, #tpu.memory_space<vmem>>) target_semaphore(%60 : memref<!tpu.dma_semaphore, #tpu.memory_space<semaphore_mem>>)
      } else {
      }
      %c1_i32_20 = arith.constant 1 : i32
      %44 = arith.cmpi eq, %38, %c1_i32_20 : i32
      %45 = arith.extui %44 : i1 to i32
      %c0_i32_21 = arith.constant 0 : i32
      %46 = arith.cmpi ne, %45, %c0_i32_21 : i32
      scf.if %46 {
        %c0_i32_25 = arith.constant 0 : i32
        %56 = tpu.memref_slice %arg8[%40, %c0_i32_25] : memref<624x128xf32, #tpu.memory_space<any>> -> memref<624x128xf32, #tpu.memory_space<any>>
        %c0_i32_26 = arith.constant 0 : i32
        %c0_i32_27 = arith.constant 0 : i32
        %57 = tpu.memref_slice %arg12[%36, %c0_i32_26, %c0_i32_27] : memref<2x624x128xf32, #tpu.memory_space<vmem>> -> memref<1x624x128xf32, #tpu.memory_space<vmem>>
        %58 = tpu.memref_squeeze %57 : memref<1x624x128xf32, #tpu.memory_space<vmem>> -> memref<624x128xf32, #tpu.memory_space<vmem>>
        %59 = tpu.memref_slice %arg13[%36] : memref<2x!tpu.dma_semaphore, #tpu.memory_space<semaphore_mem>> -> memref<1x!tpu.dma_semaphore, #tpu.memory_space<semaphore_mem>>
        %60 = tpu.memref_squeeze %59 : memref<1x!tpu.dma_semaphore, #tpu.memory_space<semaphore_mem>> -> memref<!tpu.dma_semaphore, #tpu.memory_space<semaphore_mem>>
        tpu.enqueue_dma source(%56 : memref<624x128xf32, #tpu.memory_space<any>>) target(%58 : memref<624x128xf32, #tpu.memory_space<vmem>>) target_semaphore(%60 : memref<!tpu.dma_semaphore, #tpu.memory_space<semaphore_mem>>)
      } else {
      }
      %47 = arith.index_cast %35 : i32 to index
      %48 = memref.load %arg3[%47] : memref<3xi32, #tpu.memory_space<smem>>
      %49 = arith.index_cast %35 : i32 to index
      %50 = memref.load %arg1[%49] : memref<3xi32, #tpu.memory_space<smem>>
      %c1_i32_22 = arith.constant 1 : i32
      %51 = arith.cmpi eq, %50, %c1_i32_22 : i32
      %c0_i32_23 = arith.constant 0 : i32
      %52 = arith.cmpi eq, %48, %c0_i32_23 : i32
      %53 = arith.andi %51, %52 : i1
      %54 = arith.extui %53 : i1 to i32
      %c0_i32_24 = arith.constant 0 : i32
      %55 = arith.cmpi ne, %54, %c0_i32_24 : i32
      scf.if %55 {
        %c0_i32_25 = arith.constant 0 : i32
        %56 = tpu.memref_slice %arg9[%40, %c0_i32_25] : memref<624x128xf32, #tpu.memory_space<any>> -> memref<624x128xf32, #tpu.memory_space<any>>
        %c0_i32_26 = arith.constant 0 : i32
        %c0_i32_27 = arith.constant 0 : i32
        %57 = tpu.memref_slice %arg14[%36, %c0_i32_26, %c0_i32_27] : memref<2x624x128xf32, #tpu.memory_space<vmem>> -> memref<1x624x128xf32, #tpu.memory_space<vmem>>
        %58 = tpu.memref_squeeze %57 : memref<1x624x128xf32, #tpu.memory_space<vmem>> -> memref<624x128xf32, #tpu.memory_space<vmem>>
        %59 = tpu.memref_slice %arg15[%36] : memref<2x!tpu.dma_semaphore, #tpu.memory_space<semaphore_mem>> -> memref<1x!tpu.dma_semaphore, #tpu.memory_space<semaphore_mem>>
        %60 = tpu.memref_squeeze %59 : memref<1x!tpu.dma_semaphore, #tpu.memory_space<semaphore_mem>> -> memref<!tpu.dma_semaphore, #tpu.memory_space<semaphore_mem>>
        tpu.enqueue_dma source(%56 : memref<624x128xf32, #tpu.memory_space<any>>) target(%58 : memref<624x128xf32, #tpu.memory_space<vmem>>) target_semaphore(%60 : memref<!tpu.dma_semaphore, #tpu.memory_space<semaphore_mem>>)
      } else {
      }
    } else {
    }
    %c0_i32_3 = arith.constant 0 : i32
    %c0_i32_4 = arith.constant 0 : i32
    %14 = tpu.memref_slice %arg7[%c0_i32_3, %c0_i32_4] : memref<1024x128xf32, #tpu.memory_space<any>> -> memref<624x128xf32, #tpu.memory_space<any>>
    %c0_i32_5 = arith.constant 0 : i32
    %c0_i32_6 = arith.constant 0 : i32
    %15 = tpu.memref_slice %arg12[%0, %c0_i32_5, %c0_i32_6] : memref<2x624x128xf32, #tpu.memory_space<vmem>> -> memref<1x624x128xf32, #tpu.memory_space<vmem>>
    %16 = tpu.memref_squeeze %15 : memref<1x624x128xf32, #tpu.memory_space<vmem>> -> memref<624x128xf32, #tpu.memory_space<vmem>>
    %17 = tpu.memref_slice %arg13[%0] : memref<2x!tpu.dma_semaphore, #tpu.memory_space<semaphore_mem>> -> memref<1x!tpu.dma_semaphore, #tpu.memory_space<semaphore_mem>>
    %18 = tpu.memref_squeeze %17 : memref<1x!tpu.dma_semaphore, #tpu.memory_space<semaphore_mem>> -> memref<!tpu.dma_semaphore, #tpu.memory_space<semaphore_mem>>
    tpu.wait_dma2 semaphore(%18 : memref<!tpu.dma_semaphore, #tpu.memory_space<semaphore_mem>>) src(%14 : memref<624x128xf32, #tpu.memory_space<any>>) dst(%16 : memref<624x128xf32, #tpu.memory_space<vmem>>)
    %c1_i32_7 = arith.constant 1 : i32
    %19 = arith.cmpi eq, %2, %c1_i32_7 : i32
    %20 = arith.extui %19 : i1 to i32
    %c0_i32_8 = arith.constant 0 : i32
    %21 = arith.cmpi ne, %20, %c0_i32_8 : i32
    scf.if %21 {
      %c0_i32_15 = arith.constant 0 : i32
      %c0_i32_16 = arith.constant 0 : i32
      %34 = tpu.memref_slice %arg9[%c0_i32_15, %c0_i32_16] : memref<624x128xf32, #tpu.memory_space<any>> -> memref<624x128xf32, #tpu.memory_space<any>>
      %c0_i32_17 = arith.constant 0 : i32
      %c0_i32_18 = arith.constant 0 : i32
      %35 = tpu.memref_slice %arg14[%0, %c0_i32_17, %c0_i32_18] : memref<2x624x128xf32, #tpu.memory_space<vmem>> -> memref<1x624x128xf32, #tpu.memory_space<vmem>>
      %36 = tpu.memref_squeeze %35 : memref<1x624x128xf32, #tpu.memory_space<vmem>> -> memref<624x128xf32, #tpu.memory_space<vmem>>
      %37 = tpu.memref_slice %arg15[%0] : memref<2x!tpu.dma_semaphore, #tpu.memory_space<semaphore_mem>> -> memref<1x!tpu.dma_semaphore, #tpu.memory_space<semaphore_mem>>
      %38 = tpu.memref_squeeze %37 : memref<1x!tpu.dma_semaphore, #tpu.memory_space<semaphore_mem>> -> memref<!tpu.dma_semaphore, #tpu.memory_space<semaphore_mem>>
      tpu.wait_dma2 semaphore(%38 : memref<!tpu.dma_semaphore, #tpu.memory_space<semaphore_mem>>) src(%34 : memref<624x128xf32, #tpu.memory_space<any>>) dst(%36 : memref<624x128xf32, #tpu.memory_space<vmem>>)
    } else {
    }
    %22 = arith.index_cast %0 : i32 to index
    %c0 = arith.constant 0 : index
    %c0_9 = arith.constant 0 : index
    %23 = vector.load %arg12[%22, %c0, %c0_9] : memref<2x624x128xf32, #tpu.memory_space<vmem>>, vector<1x624x128xf32>
    %24 = vector.shape_cast %23 : vector<1x624x128xf32> to vector<624x128xf32>
    %c0_i32_10 = arith.constant 0 : i32
    %25 = arith.cmpi eq, %2, %c0_i32_10 : i32
    %26 = arith.extui %25 : i1 to i32
    %c0_i32_11 = arith.constant 0 : i32
    %27 = arith.cmpi ne, %26, %c0_i32_11 : i32
    scf.if %27 {
      %34 = math.log %24 : vector<624x128xf32>
      %c0_i32_15 = arith.constant 0 : i32
      %35 = arith.cmpi eq, %4, %c0_i32_15 : i32
      %36 = arith.extui %35 : i1 to i32
      %c0_i32_16 = arith.constant 0 : i32
      %37 = arith.cmpi ne, %36, %c0_i32_16 : i32
      scf.if %37 {
        %c0_19 = arith.constant 0 : index
        %c0_20 = arith.constant 0 : index
        %41 = vector.load %arg16[%c0_19, %c0_20] : memref<8x128xf32, #tpu.memory_space<vmem>>, vector<8x128xf32>
        %42 = vector.shape_cast %34 : vector<624x128xf32> to vector<78x8x128xf32>
        %cst = arith.constant dense<0.000000e+00> : vector<8x128xf32>
        %43 = vector.multi_reduction <add>, %42, %cst [0] : vector<78x8x128xf32> to vector<8x128xf32>
        %44 = vector.broadcast %6 : f32 to vector<8x128xf32>
        %45 = arith.mulf %44, %43 : vector<8x128xf32>
        %46 = arith.addf %41, %45 : vector<8x128xf32>
        %c0_21 = arith.constant 0 : index
        %c0_22 = arith.constant 0 : index
        %47 = vector.load %arg16[%c0_21, %c0_22] : memref<8x128xf32, #tpu.memory_space<vmem>>, vector<8x128xf32>
        tpu.vector_store %arg16[%c0_21, %c0_22], %46 {strides = array<i32>} : memref<8x128xf32, #tpu.memory_space<vmem>>, vector<8x128xf32>,
      } else {
      }
      %c0_i32_17 = arith.constant 0 : i32
      %38 = arith.cmpi sgt, %4, %c0_i32_17 : i32
      %39 = arith.extui %38 : i1 to i32
      %c0_i32_18 = arith.constant 0 : i32
      %40 = arith.cmpi ne, %39, %c0_i32_18 : i32
      scf.if %40 {
        %41 = tpu.iota {dimensions = array<i32: 0>} : vector<624x128xi32>
        %42 = vector.broadcast %4 : i32 to vector<624x128xi32>
        %43 = arith.cmpi sge, %41, %42 : vector<624x128xi32>
        %cst = arith.constant 0.000000e+00 : f32
        %44 = vector.broadcast %cst : f32 to vector<624x128xf32>
        %45 = arith.select %43, %34, %44 : vector<624x128xi1>, vector<624x128xf32>
        %c0_19 = arith.constant 0 : index
        %c0_20 = arith.constant 0 : index
        %46 = vector.load %arg16[%c0_19, %c0_20] : memref<8x128xf32, #tpu.memory_space<vmem>>, vector<8x128xf32>
        %47 = vector.shape_cast %45 : vector<624x128xf32> to vector<78x8x128xf32>
        %cst_21 = arith.constant dense<0.000000e+00> : vector<8x128xf32>
        %48 = vector.multi_reduction <add>, %47, %cst_21 [0] : vector<78x8x128xf32> to vector<8x128xf32>
        %49 = vector.broadcast %6 : f32 to vector<8x128xf32>
        %50 = arith.mulf %49, %48 : vector<8x128xf32>
        %51 = arith.addf %46, %50 : vector<8x128xf32>
        %c0_22 = arith.constant 0 : index
        %c0_23 = arith.constant 0 : index
        %52 = vector.load %arg16[%c0_22, %c0_23] : memref<8x128xf32, #tpu.memory_space<vmem>>, vector<8x128xf32>
        tpu.vector_store %arg16[%c0_22, %c0_23], %51 {strides = array<i32>} : memref<8x128xf32, #tpu.memory_space<vmem>>, vector<8x128xf32>,
      } else {
      }
    } else {
    }
    %c1_i32_12 = arith.constant 1 : i32
    %28 = arith.cmpi eq, %2, %c1_i32_12 : i32
    %29 = arith.extui %28 : i1 to i32
    %c0_i32_13 = arith.constant 0 : i32
    %30 = arith.cmpi ne, %29, %c0_i32_13 : i32
    scf.if %30 {
      %34 = arith.index_cast %0 : i32 to index
      %c0_15 = arith.constant 0 : index
      %c0_16 = arith.constant 0 : index
      %35 = vector.load %arg14[%34, %c0_15, %c0_16] : memref<2x624x128xf32, #tpu.memory_space<vmem>>, vector<1x624x128xf32>
      %36 = vector.shape_cast %35 : vector<1x624x128xf32> to vector<624x128xf32>
      %37 = arith.subf %24, %36 : vector<624x128xf32>
      %38 = arith.mulf %37, %37 : vector<624x128xf32>
      %c0_i32_17 = arith.constant 0 : i32
      %39 = arith.cmpi eq, %4, %c0_i32_17 : i32
      %40 = arith.extui %39 : i1 to i32
      %c0_i32_18 = arith.constant 0 : i32
      %41 = arith.cmpi ne, %40, %c0_i32_18 : i32
      scf.if %41 {
        %c0_21 = arith.constant 0 : index
        %c0_22 = arith.constant 0 : index
        %45 = vector.load %arg17[%c0_21, %c0_22] : memref<8x128xf32, #tpu.memory_space<vmem>>, vector<8x128xf32>
        %46 = vector.shape_cast %38 : vector<624x128xf32> to vector<78x8x128xf32>
        %cst = arith.constant dense<0.000000e+00> : vector<8x128xf32>
        %47 = vector.multi_reduction <add>, %46, %cst [0] : vector<78x8x128xf32> to vector<8x128xf32>
        %48 = vector.broadcast %6 : f32 to vector<8x128xf32>
        %49 = arith.mulf %48, %47 : vector<8x128xf32>
        %50 = arith.addf %45, %49 : vector<8x128xf32>
        %c0_23 = arith.constant 0 : index
        %c0_24 = arith.constant 0 : index
        %51 = vector.load %arg17[%c0_23, %c0_24] : memref<8x128xf32, #tpu.memory_space<vmem>>, vector<8x128xf32>
        tpu.vector_store %arg17[%c0_23, %c0_24], %50 {strides = array<i32>} : memref<8x128xf32, #tpu.memory_space<vmem>>, vector<8x128xf32>,
      } else {
      }
      %c0_i32_19 = arith.constant 0 : i32
      %42 = arith.cmpi sgt, %4, %c0_i32_19 : i32
      %43 = arith.extui %42 : i1 to i32
      %c0_i32_20 = arith.constant 0 : i32
      %44 = arith.cmpi ne, %43, %c0_i32_20 : i32
      scf.if %44 {
        %45 = tpu.iota {dimensions = array<i32: 0>} : vector<624x128xi32>
        %46 = vector.broadcast %4 : i32 to vector<624x128xi32>
        %47 = arith.cmpi sge, %45, %46 : vector<624x128xi32>
        %cst = arith.constant 0.000000e+00 : f32
        %48 = vector.broadcast %cst : f32 to vector<624x128xf32>
        %49 = arith.select %47, %38, %48 : vector<624x128xi1>, vector<624x128xf32>
        %c0_21 = arith.constant 0 : index
        %c0_22 = arith.constant 0 : index
        %50 = vector.load %arg17[%c0_21, %c0_22] : memref<8x128xf32, #tpu.memory_space<vmem>>, vector<8x128xf32>
        %51 = vector.shape_cast %49 : vector<624x128xf32> to vector<78x8x128xf32>
        %cst_23 = arith.constant dense<0.000000e+00> : vector<8x128xf32>
        %52 = vector.multi_reduction <add>, %51, %cst_23 [0] : vector<78x8x128xf32> to vector<8x128xf32>
        %53 = vector.broadcast %6 : f32 to vector<8x128xf32>
        %54 = arith.mulf %53, %52 : vector<8x128xf32>
        %55 = arith.addf %50, %54 : vector<8x128xf32>
        %c0_24 = arith.constant 0 : index
        %c0_25 = arith.constant 0 : index
        %56 = vector.load %arg17[%c0_24, %c0_25] : memref<8x128xf32, #tpu.memory_space<vmem>>, vector<8x128xf32>
        tpu.vector_store %arg17[%c0_24, %c0_25], %55 {strides = array<i32>} : memref<8x128xf32, #tpu.memory_space<vmem>>, vector<8x128xf32>,
      } else {
      }
    } else {
    }
    %c2_i32 = arith.constant 2 : i32
    %31 = arith.cmpi eq, %arg0, %c2_i32 : i32
    %32 = arith.extui %31 : i1 to i32
    %c0_i32_14 = arith.constant 0 : i32
    %33 = arith.cmpi ne, %32, %c0_i32_14 : i32
    scf.if %33 {
      %cst = arith.constant 0.000000e+00 : f32
      %34 = vector.broadcast %cst : f32 to vector<8x128xf32>
      %c0_15 = arith.constant 0 : index
      %c0_16 = arith.constant 0 : index
      %35 = vector.load %arg16[%c0_15, %c0_16] : memref<8x128xf32, #tpu.memory_space<vmem>>, vector<8x128xf32>
      %36 = vector.shape_cast %35 : vector<8x128xf32> to vector<1x8x128xf32>
      %cst_17 = arith.constant dense<0.000000e+00> : vector<1xf32>
      %37 = vector.multi_reduction <add>, %36, %cst_17 [1, 2] : vector<1x8x128xf32> to vector<1xf32>
      %38 = vector.shape_cast %37 : vector<1xf32> to vector<1x1x1xf32>
      %39 = vector.extract %38[0, 0, 0] : f32 from vector<1x1x1xf32>
      %40 = vector.broadcast %39 : f32 to vector<8x128xf32>
      %41 = arith.addf %34, %40 : vector<8x128xf32>
      %c0_18 = arith.constant 0 : index
      %c0_19 = arith.constant 0 : index
      %42 = vector.load %arg10[%c0_18, %c0_19] : memref<8x128xf32, #tpu.memory_space<vmem>>, vector<8x128xf32>
      tpu.vector_store %arg10[%c0_18, %c0_19], %41 {strides = array<i32>} : memref<8x128xf32, #tpu.memory_space<vmem>>, vector<8x128xf32>,
      %cst_20 = arith.constant 0.000000e+00 : f32
      %43 = vector.broadcast %cst_20 : f32 to vector<8x128xf32>
      %c0_21 = arith.constant 0 : index
      %c0_22 = arith.constant 0 : index
      %44 = vector.load %arg17[%c0_21, %c0_22] : memref<8x128xf32, #tpu.memory_space<vmem>>, vector<8x128xf32>
      %45 = vector.shape_cast %44 : vector<8x128xf32> to vector<1x8x128xf32>
      %cst_23 = arith.constant dense<0.000000e+00> : vector<1xf32>
      %46 = vector.multi_reduction <add>, %45, %cst_23 [1, 2] : vector<1x8x128xf32> to vector<1xf32>
      %47 = vector.shape_cast %46 : vector<1xf32> to vector<1x1x1xf32>
      %48 = vector.extract %47[0, 0, 0] : f32 from vector<1x1x1xf32>
      %49 = vector.broadcast %48 : f32 to vector<8x128xf32>
      %50 = arith.addf %43, %49 : vector<8x128xf32>
      %c0_24 = arith.constant 0 : index
      %c0_25 = arith.constant 0 : index
      %51 = vector.load %arg11[%c0_24, %c0_25] : memref<8x128xf32, #tpu.memory_space<vmem>>, vector<8x128xf32>
      tpu.vector_store %arg11[%c0_24, %c0_25], %50 {strides = array<i32>} : memref<8x128xf32, #tpu.memory_space<vmem>>, vector<8x128xf32>,
    } else {
    }
    return
  }
  func.func @transform_3(%arg0: i32, %arg1: memref<3xi32, #tpu.memory_space<smem>>, %arg2: memref<3xi32, #tpu.memory_space<smem>>, %arg3: memref<3xi32, #tpu.memory_space<smem>>, %arg4: memref<3xi32, #tpu.memory_space<smem>>, %arg5: memref<3xi32, #tpu.memory_space<smem>>, %arg6: memref<3xf32, #tpu.memory_space<smem>>) -> (i32, i32) {
    %c0_i32 = arith.constant 0 : i32
    %c0_i32_0 = arith.constant 0 : i32
    %c0_i32_1 = arith.constant 0 : i32
    return %c0_i32, %c0_i32_0 : i32, i32
  }
  func.func @transform_4(%arg0: i32, %arg1: memref<3xi32, #tpu.memory_space<smem>>, %arg2: memref<3xi32, #tpu.memory_space<smem>>, %arg3: memref<3xi32, #tpu.memory_space<smem>>, %arg4: memref<3xi32, #tpu.memory_space<smem>>, %arg5: memref<3xi32, #tpu.memory_space<smem>>, %arg6: memref<3xf32, #tpu.memory_space<smem>>) -> (i32, i32) {
    %c0_i32 = arith.constant 0 : i32
    %c0_i32_0 = arith.constant 0 : i32
    %c0_i32_1 = arith.constant 0 : i32
    return %c0_i32, %c0_i32_0 : i32, i32
  }
}

</mosaic_0001>

<llo_original>
// kernel: tpu_custom_call.1
$region0: #{tpu_custom_call.1}
  #allocation0 [shape = 'u32[]', space=smem, size = 0x4, offset = 0x4, fixed_abs, tag = 'smem constant byte address 0x4 - core index']
  #allocation1 [shape = 'u32[72,128]{1,0:T(1,128)}', space=vmem, size = 0x9000, scoped, tag = 'internal scratch']
  #allocation2 [shape = 'f32[2,624,128]{2,1,0:T(8,128)}', space=vmem, size = 0x9c000, scoped, tag = 'scratch operand']
  #allocation3 [shape = 's32[2]{0}', space=sflag, size = 0x8, scoped, tag = 'scratch operand']
  #allocation4 [shape = 'f32[2,624,128]{2,1,0:T(8,128)}', space=vmem, size = 0x9c000, scoped, tag = 'scratch operand']
  #allocation5 [shape = 's32[2]{0}', space=sflag, size = 0x8, scoped, tag = 'scratch operand']
  #allocation6 [shape = 'f32[8,128]{1,0:T(8,128)}', space=vmem, size = 0x1000, scoped, tag = 'scratch operand']
  #allocation7 [shape = 'f32[8,128]{1,0:T(8,128)}', space=vmem, size = 0x1000, scoped, tag = 'scratch operand']
  #allocation8 [shape = 's32[1]{0}', space=sflag, size = 0x4, scoped, tag = 'scoped memory for tpu_custom_call.1']
  #allocation9 [shape = 'u8[512]{0}', space=smem, size = 0x200, scoped, tag = 'prefetched SMEM operand 0']
  #allocation10 [shape = 'u8[512]{0}', space=smem, size = 0x200, scoped, tag = 'prefetched SMEM operand 1']
  #allocation11 [shape = 'u8[512]{0}', space=smem, size = 0x200, scoped, tag = 'prefetched SMEM operand 2']
  #allocation12 [shape = 'u8[512]{0}', space=smem, size = 0x200, scoped, tag = 'prefetched SMEM operand 3']
  #allocation13 [shape = 'u8[512]{0}', space=smem, size = 0x200, scoped, tag = 'prefetched SMEM operand 4']
  #allocation14 [shape = 'u8[512]{0}', space=smem, size = 0x200, scoped, tag = 'prefetched SMEM operand 5']
  #allocation19 [shape = 's32[]', space=sflag, size = 0x4, offset = 0, fixed_abs, tag = 'sflag constant byte address 0x0 - dummy sync flag']
  #allocation20 [shape = 's32[]', space=sflag, size = 0x4, offset = 0, fixed_abs, tag = 'sflag constant byte address 0x0 - dummy sync flag']
  #allocation21 [shape = 'u32[]', space=smem, size = 0x4, offset = 0x44, fixed_abs, tag = 'smem constant byte address 0x44 - assertion arg 0']
  #allocation22 [shape = 'u32[]', space=smem, size = 0x4, offset = 0x48, fixed_abs, tag = 'smem constant byte address 0x48 - assertion arg 1']
  #allocation23 [shape = 's32[]', space=sflag, size = 0x4, offset = 0, fixed_abs, tag = 'sflag constant byte address 0x0 - dummy sync flag']
  #allocation24 [shape = 's32[]', space=sflag, size = 0x4, offset = 0, fixed_abs, tag = 'sflag constant byte address 0x0 - dummy sync flag']
  #allocation25 [shape = 's32[]', space=sflag, size = 0x4, offset = 0, fixed_abs, tag = 'sflag constant byte address 0x0 - dummy sync flag']
  #allocation26 [shape = 's32[]', space=sflag, size = 0x4, offset = 0, fixed_abs, tag = 'sflag constant byte address 0x0 - dummy sync flag']
  #allocation27 [shape = 's32[]', space=sflag, size = 0x4, offset = 0, fixed_abs, tag = 'sflag constant byte address 0x0 - dummy sync flag']
  #allocation28 [shape = 's32[]', space=sflag, size = 0x4, offset = 0, fixed_abs, tag = 'sflag constant byte address 0x0 - dummy sync flag']
  #allocation29 [shape = 's32[]', space=sflag, size = 0x4, offset = 0, fixed_abs, tag = 'sflag constant byte address 0x0 - dummy sync flag']
  #allocation30 [shape = 's32[]', space=sflag, size = 0x4, offset = 0, fixed_abs, tag = 'sflag constant byte address 0x0 - dummy sync flag']
  #allocation31 [shape = 's32[]', space=sflag, size = 0x4, offset = 0, fixed_abs, tag = 'sflag constant byte address 0x0 - dummy sync flag']
  #allocation32 [shape = 's32[]', space=sflag, size = 0x4, offset = 0, fixed_abs, tag = 'sflag constant byte address 0x0 - dummy sync flag']
  %s0 = inlined_call_operand.hbm [shape: s32[3], index: 0, kind: input, shape index: {}]
  %s1 = inlined_call_operand.hbm [shape: s32[3], index: 1, kind: input, shape index: {}]
  %s2 = inlined_call_operand.vmem [shape: s32[3], index: 2, kind: input, shape index: {}]
  %s3 = inlined_call_operand.vmem [shape: s32[3], index: 3, kind: input, shape index: {}]
  %s4 = inlined_call_operand.vmem [shape: s32[3], index: 4, kind: input, shape index: {}]
  %s5 = inlined_call_operand.vmem [shape: f32[3], index: 5, kind: input, shape index: {}]
  %s6 = inlined_call_operand.hbm [shape: f32[1024,128], index: 6, kind: input, shape index: {}]
  %s7 = inlined_call_operand.hbm [shape: f32[624,128], index: 7, kind: input, shape index: {}]
  %s8 = inlined_call_operand.hbm [shape: f32[624,128], index: 8, kind: input, shape index: {}]
  %s9 = inlined_call_operand.hbm [shape: f32[8,128], index: 9, kind: output, shape index: {0}]
  %s10 = inlined_call_operand.hbm [shape: f32[8,128], index: 10, kind: output, shape index: {1}]
  %11 = xla_tuple %s9, %s10
  %s12 = sld [smem:[#allocation0]]
  $region121: #{tpu_custom_call.1} parent=0
    _
  %s14 = ssub.s32 1, %s12
  %s15 = scalar_select 0, %s14, %s12
  %s17 = sshll.u32 %s0, 4
  %s18 = int_to_ptr.hbm [resolvable:$true] %s17
  %20 = dma.hbm_to_smem %s18, 16, [#allocation9], [#allocation8]
  %s22 = sshll.u32 %s1, 4
  %s23 = int_to_ptr.hbm [resolvable:$true] %s22
  %25 = dma.hbm_to_smem %s23, 16, [#allocation10], [#allocation8]
  %s27 = sshll.u32 %s2, 4
  %s28 = int_to_ptr.vmem [resolvable:$true] %s27
  %30 = dma.vmem_to_smem %s28, 16, [#allocation11], [#allocation8]
  %s32 = sshll.u32 %s3, 4
  %s33 = int_to_ptr.vmem [resolvable:$true] %s32
  %35 = dma.vmem_to_smem %s33, 16, [#allocation12], [#allocation8]
  %s37 = sshll.u32 %s4, 4
  %s38 = int_to_ptr.vmem [resolvable:$true] %s37
  %40 = dma.vmem_to_smem %s38, 16, [#allocation13], [#allocation8]
  %s42 = sshll.u32 %s5, 4
  %s43 = int_to_ptr.vmem [resolvable:$true] %s42
  %45 = dma.vmem_to_smem %s43, 16, [#allocation14], [#allocation8]
  %47 = dma.done [#allocation8], 96
  %48 = sfence
  $region1: #{tpu_custom_call.1} parent=0
    #allocation15 [shape = 'u8[4096]{0}', space=vmem, size = 0x1000, scoped, tag = 'output window, operand 0, single buffered']
    #allocation16 [shape = 's32[2]{0}', space=sflag, size = 0x8, scoped, tag = 'scoped memory for tpu_custom_call.1']
    #allocation17 [shape = 'u8[4096]{0}', space=vmem, size = 0x1000, scoped, tag = 'output window, operand 1, single buffered']
    #allocation18 [shape = 's32[1]{0}', space=sflag, size = 0x4, scoped, tag = 'scoped memory for tpu_custom_call.1']
    %49 = vsyncpa [#allocation16], 0
    %50 = vsyncpa [#allocation18], 0
    loop: start=0, step=1, limit=4
    $region2: #{tpu_custom_call.1} parent=1 // loop_pre_header
      _
    $region3: #{tpu_custom_call.1} parent=1 // loop_header
      %s52 = sphi 0, %s56
      %p53 = scmp.ge.s32.totalorder %s52, 4
      %s59 = sphi 0, %s59
      %s61 = sphi 0, %s59
      %s69 = sphi 0, %s61
      %s73 = sphi 0, %s73
      %s75 = sphi 0, %s73
      %s83 = sphi 0, %s75
    $region4: #{tpu_custom_call.1} parent=1 // loop_header_branch
      %55 = sbr.rel (%p53) target = $region8
    $region5: #{tpu_custom_call.1} parent=1 // loop_body
      %s57 = ssub.s32 %s52, 1
      %s58 = sadd.s32 %s52, 1
      %s60 = sadd.s32 %s59, 1
      %p62 = scmp.eq.s32.totalorder %s52, 2
      %p63 = scmp.ne.s32.totalorder %s59, %s61
      %p64 = scmp.eq.s32.totalorder %s52, 0
      %p65 = por %p63, %p64
      %p66 = scmp.ne.s32.totalorder %s59, %s61
      %p67 = scmp.eq.s32.totalorder %s57, 2
      %p68 = por %p66, %p67
      %p70 = scmp.ne.s32.totalorder %s61, %s69
      %p71 = scmp.eq.s32.totalorder %s57, 0
      %p72 = por %p70, %p71
      %s74 = sadd.s32 %s73, 1
      %p76 = scmp.eq.s32.totalorder %s52, 2
      %p77 = scmp.ne.s32.totalorder %s73, %s75
      %p78 = scmp.eq.s32.totalorder %s52, 0
      %p79 = por %p77, %p78
      %p80 = scmp.ne.s32.totalorder %s73, %s75
      %p81 = scmp.eq.s32.totalorder %s57, 2
      %p82 = por %p80, %p81
      %p84 = scmp.ne.s32.totalorder %s75, %s83
      %p85 = scmp.eq.s32.totalorder %s57, 0
      %p86 = por %p84, %p85
      %p87 = scmp.lt.s32.totalorder %s52, 3
      // Predicated region
      $region9: #{tpu_custom_call.1} parent=5 // pred_check
        %p88 = pneg %p87
      $region10: #{tpu_custom_call.1} parent=5 // pred_check_branch
        %90 = sbr.rel (%p88) target = $region12
      $region11: #{tpu_custom_call.1} parent=5 // pred_region
        %p91 = pneg %p65
        %p92 = pneg %p62
        %p93 = pneg %p79
        %p94 = pneg %p76
        %s95 = sand.u32 %s52, 1
        %s96 = sld [smem:[#allocation9 + %s52]]
        %s97 = sld [smem:[#allocation13 + %s52]]
        %s98 = sld [smem:[#allocation14 + %s52]]
        %p99 = scmp.eq.s32.totalorder %s52, 0
        // Predicated region
        $region13: #{tpu_custom_call.1} parent=11 // pred_check
          %p100 = pneg %p99
        $region14: #{tpu_custom_call.1} parent=11 // pred_check_branch
          %102 = sbr.rel (%p100) target = $region16
        $region15: #{tpu_custom_call.1} parent=11 // pred_region
          %103 = vst [vmem:[#allocation6] sm:$0xff] 0.0
          %104 = vst [vmem:[#allocation7] sm:$0xff] 0.0
          %s105 = sld [smem:[#allocation10]]
          %s106 = sld [smem:[#allocation12]]
          %p107 = scmp.eq.s32.totalorder %s105, 0
          // Predicated region
          $region17: #{tpu_custom_call.1} parent=15 // pred_check
            %p108 = pneg %p107
          $region18: #{tpu_custom_call.1} parent=15 // pred_check_branch
            %110 = sbr.rel (%p108) target = $region20
          $region19: #{tpu_custom_call.1} parent=15 // pred_region
            %s111 = scalar_lea.hbm %s6, %s106
            // Predicated region
            $region21: #{tpu_custom_call.1} parent=19 // pred_check
              _
            $region22: #{tpu_custom_call.1} parent=19 // pred_check_branch
              %113 = sbr.rel target = $region24
            $region23: #{tpu_custom_call.1} parent=19 // pred_region
              %114 = sst [smem:[#allocation21]] [#allocation20]
              %115 = sst [smem:[#allocation22]] [#allocation19]
            $region24: #{tpu_custom_call.1} parent=19 // pred_fallthru
              _
            %117 = shalt.err (0)
            %s119 = sshll.u32 %s111, 4
            %s120 = int_to_ptr.hbm [resolvable:$true] %s119
            %s121 = sshll.u32 [#allocation2], 4
            %s122 = int_to_ptr.vmem [resolvable:$true] %s121
            %124 = dma.hbm_to_vmem [thread:$0]  %s120, 9984, %s122, [#allocation3]
          $region20: #{tpu_custom_call.1} parent=15 // pred_fallthru
            _
          %p125 = scmp.eq.s32.totalorder %s105, 1
          // Predicated region
          $region25: #{tpu_custom_call.1} parent=15 // pred_check
            %p126 = pneg %p125
          $region26: #{tpu_custom_call.1} parent=15 // pred_check_branch
            %128 = sbr.rel (%p126) target = $region28
          $region27: #{tpu_custom_call.1} parent=15 // pred_region
            %s129 = scalar_lea.hbm %s7, %s106
            // Predicated region
            $region29: #{tpu_custom_call.1} parent=27 // pred_check
              _
            $region30: #{tpu_custom_call.1} parent=27 // pred_check_branch
              %131 = sbr.rel target = $region32
            $region31: #{tpu_custom_call.1} parent=27 // pred_region
              %132 = sst [smem:[#allocation21]] [#allocation24]
              %133 = sst [smem:[#allocation22]] [#allocation23]
            $region32: #{tpu_custom_call.1} parent=27 // pred_fallthru
              _
            %135 = shalt.err (0)
            %s137 = sshll.u32 %s129, 4
            %s138 = int_to_ptr.hbm [resolvable:$true] %s137
            %s139 = sshll.u32 [#allocation2], 4
            %s140 = int_to_ptr.vmem [resolvable:$true] %s139
            %142 = dma.hbm_to_vmem [thread:$0]  %s138, 9984, %s140, [#allocation3]
          $region28: #{tpu_custom_call.1} parent=15 // pred_fallthru
            _
          %s143 = sld [smem:[#allocation11]]
          %s144 = sld [smem:[#allocation9]]
          %p145 = scmp.eq.s32.totalorder %s144, 1
          %p146 = scmp.eq.s32.totalorder %s143, 0
          %p147 = pnand %p145, %p146
          %p148 = pneg %p147
          // Predicated region
          $region33: #{tpu_custom_call.1} parent=15 // pred_check
            _
          $region34: #{tpu_custom_call.1} parent=15 // pred_check_branch
            %150 = sbr.rel (%p147) target = $region36
          $region35: #{tpu_custom_call.1} parent=15 // pred_region
            %s151 = scalar_lea.hbm %s8, %s106
            // Predicated region
            $region37: #{tpu_custom_call.1} parent=35 // pred_check
              _
            $region38: #{tpu_custom_call.1} parent=35 // pred_check_branch
              %153 = sbr.rel target = $region40
            $region39: #{tpu_custom_call.1} parent=35 // pred_region
              %154 = sst [smem:[#allocation21]] [#allocation26]
              %155 = sst [smem:[#allocation22]] [#allocation25]
            $region40: #{tpu_custom_call.1} parent=35 // pred_fallthru
              _
            %157 = shalt.err (0)
            %s159 = sshll.u32 %s151, 4
            %s160 = int_to_ptr.hbm [resolvable:$true] %s159
            %s161 = sshll.u32 [#allocation4], 4
            %s162 = int_to_ptr.vmem [resolvable:$true] %s161
            %164 = dma.hbm_to_vmem [thread:$0]  %s160, 9984, %s162, [#allocation5]
          $region36: #{tpu_custom_call.1} parent=15 // pred_fallthru
            _
        $region16: #{tpu_custom_call.1} parent=11 // pred_fallthru
          _
        %s165 = sadd.s32 %s52, 1
        %p166 = scmp.lt.s32.totalorder %s165, 3
        // Predicated region
        $region41: #{tpu_custom_call.1} parent=11 // pred_check
          %p167 = pneg %p166
        $region42: #{tpu_custom_call.1} parent=11 // pred_check_branch
          %169 = sbr.rel (%p167) target = $region44
        $region43: #{tpu_custom_call.1} parent=11 // pred_region
          %p170 = scmp.lt.s32.totalorder %s165, 2
          %s171 = scalar_select %p170, %s165, 2
          %s172 = ssub.s32 1, %s95
          %s173 = sld [smem:[#allocation10 + %s171]]
          %s174 = sld [smem:[#allocation12 + %s171]]
          %p175 = scmp.eq.s32.totalorder %s173, 0
          // Predicated region
          $region45: #{tpu_custom_call.1} parent=43 // pred_check
            %p176 = pneg %p175
          $region46: #{tpu_custom_call.1} parent=43 // pred_check_branch
            %178 = sbr.rel (%p176) target = $region48
          $region47: #{tpu_custom_call.1} parent=43 // pred_region
            %s179 = scalar_lea.hbm %s6, %s174
            %s180 = smul.u32 %s172, 624
            %s181 = scalar_lea.vmem [#allocation2], %s180
            %s182 = scalar_lea.sflag [#allocation3], %s172
            // Predicated region
            $region49: #{tpu_custom_call.1} parent=47 // pred_check
              _
            $region50: #{tpu_custom_call.1} parent=47 // pred_check_branch
              %184 = sbr.rel target = $region52
            $region51: #{tpu_custom_call.1} parent=47 // pred_region
              %185 = sst [smem:[#allocation21]] [#allocation28]
              %186 = sst [smem:[#allocation22]] [#allocation27]
            $region52: #{tpu_custom_call.1} parent=47 // pred_fallthru
              _
            %188 = shalt.err (0)
            %s190 = sshll.u32 %s179, 4
            %s191 = int_to_ptr.hbm [resolvable:$true] %s190
            %s192 = sshll.u32 %s181, 4
            %s193 = int_to_ptr.vmem [resolvable:$true] %s192
            %195 = dma.hbm_to_vmem [thread:$0]  %s191, 9984, %s193, %s182
          $region48: #{tpu_custom_call.1} parent=43 // pred_fallthru
            _
          %p196 = scmp.eq.s32.totalorder %s173, 1
          // Predicated region
          $region53: #{tpu_custom_call.1} parent=43 // pred_check
            %p197 = pneg %p196
          $region54: #{tpu_custom_call.1} parent=43 // pred_check_branch
            %199 = sbr.rel (%p197) target = $region56
          $region55: #{tpu_custom_call.1} parent=43 // pred_region
            %s200 = scalar_lea.hbm %s7, %s174
            %s201 = smul.u32 %s172, 624
            %s202 = scalar_lea.vmem [#allocation2], %s201
            %s203 = scalar_lea.sflag [#allocation3], %s172
            // Predicated region
            $region57: #{tpu_custom_call.1} parent=55 // pred_check
              _
            $region58: #{tpu_custom_call.1} parent=55 // pred_check_branch
              %205 = sbr.rel target = $region60
            $region59: #{tpu_custom_call.1} parent=55 // pred_region
              %206 = sst [smem:[#allocation21]] [#allocation30]
              %207 = sst [smem:[#allocation22]] [#allocation29]
            $region60: #{tpu_custom_call.1} parent=55 // pred_fallthru
              _
            %209 = shalt.err (0)
            %s211 = sshll.u32 %s200, 4
            %s212 = int_to_ptr.hbm [resolvable:$true] %s211
            %s213 = sshll.u32 %s202, 4
            %s214 = int_to_ptr.vmem [resolvable:$true] %s213
            %216 = dma.hbm_to_vmem [thread:$0]  %s212, 9984, %s214, %s203
          $region56: #{tpu_custom_call.1} parent=43 // pred_fallthru
            _
          %s217 = sld [smem:[#allocation11 + %s171]]
          %s218 = sld [smem:[#allocation9 + %s171]]
          %p219 = scmp.eq.s32.totalorder %s218, 1
          %p220 = scmp.eq.s32.totalorder %s217, 0
          %p221 = pnand %p219, %p220
          %p222 = pneg %p221
          // Predicated region
          $region61: #{tpu_custom_call.1} parent=43 // pred_check
            _
          $region62: #{tpu_custom_call.1} parent=43 // pred_check_branch
            %224 = sbr.rel (%p221) target = $region64
          $region63: #{tpu_custom_call.1} parent=43 // pred_region
            %s225 = scalar_lea.hbm %s8, %s174
            %s226 = smul.u32 %s172, 624
            %s227 = scalar_lea.vmem [#allocation4], %s226
            %s228 = scalar_lea.sflag [#allocation5], %s172
            // Predicated region
            $region65: #{tpu_custom_call.1} parent=63 // pred_check
              _
            $region66: #{tpu_custom_call.1} parent=63 // pred_check_branch
              %230 = sbr.rel target = $region68
            $region67: #{tpu_custom_call.1} parent=63 // pred_region
              %231 = sst [smem:[#allocation21]] [#allocation32]
              %232 = sst [smem:[#allocation22]] [#allocation31]
            $region68: #{tpu_custom_call.1} parent=63 // pred_fallthru
              _
            %234 = shalt.err (0)
            %s236 = sshll.u32 %s225, 4
            %s237 = int_to_ptr.hbm [resolvable:$true] %s236
            %s238 = sshll.u32 %s227, 4
            %s239 = int_to_ptr.vmem [resolvable:$true] %s238
            %241 = dma.hbm_to_vmem [thread:$0]  %s237, 9984, %s239, %s228
          $region64: #{tpu_custom_call.1} parent=43 // pred_fallthru
            _
        $region44: #{tpu_custom_call.1} parent=11 // pred_fallthru
          _
        %s242 = smul.u32 %s95, 624
        %s243 = scalar_lea.vmem [#allocation2], %s242
        %s244 = scalar_lea.sflag [#allocation3], %s95
        %s245 = smul.u32 624, 1
        %s246 = sshll.u32 %s245, 4
        %247 = dma.done %s244, %s246
        %p248 = scmp.eq.s32.totalorder %s96, 1
        // Predicated region
        $region69: #{tpu_custom_call.1} parent=11 // pred_check
          %p249 = pneg %p248
        $region70: #{tpu_custom_call.1} parent=11 // pred_check_branch
          %251 = sbr.rel (%p249) target = $region72
        $region71: #{tpu_custom_call.1} parent=11 // pred_region
          %s252 = scalar_lea.sflag [#allocation5], %s95
          %s253 = sshll.u32 %s245, 4
          %254 = dma.done %s252, %s253
        $region72: #{tpu_custom_call.1} parent=11 // pred_fallthru
          _
        %v255 = vld [vmem:[%s243] sm:$0xff]
        %v256 = vld [vmem:[%s243 + $0x8] sm:$0xff]
        %v257 = vld [vmem:[%s243 + $0x10] sm:$0xff]
        %v258 = vld [vmem:[%s243 + $0x18] sm:$0xff]
        %v259 = vld [vmem:[%s243 + $0x20] sm:$0xff]
        %v260 = vld [vmem:[%s243 + $0x28] sm:$0xff]
        %v261 = vld [vmem:[%s243 + $0x30] sm:$0xff]
        %v262 = vld [vmem:[%s243 + $0x38] sm:$0xff]
        %v263 = vld [vmem:[%s243 + $0x40] sm:$0xff]
        %v264 = vld [vmem:[%s243 + $0x48] sm:$0xff]
        %v265 = vld [vmem:[%s243 + $0x50] sm:$0xff]
        %v266 = vld [vmem:[%s243 + $0x58] sm:$0xff]
        %v267 = vld [vmem:[%s243 + $0x60] sm:$0xff]
        %v268 = vld [vmem:[%s243 + $0x68] sm:$0xff]
        %v269 = vld [vmem:[%s243 + $0x70] sm:$0xff]
        %v270 = vld [vmem:[%s243 + $0x78] sm:$0xff]
        %v271 = vld [vmem:[%s243 + $0x80] sm:$0xff]
        %v272 = vld [vmem:[%s243 + $0x88] sm:$0xff]
        %v273 = vld [vmem:[%s243 + $0x90] sm:$0xff]
        %v274 = vld [vmem:[%s243 + $0x98] sm:$0xff]
        %v275 = vld [vmem:[%s243 + $0xa0] sm:$0xff]
        %v276 = vld [vmem:[%s243 + $0xa8] sm:$0xff]
        %v277 = vld [vmem:[%s243 + $0xb0] sm:$0xff]
        %v278 = vld [vmem:[%s243 + $0xb8] sm:$0xff]
        %v279 = vld [vmem:[%s243 + $0xc0] sm:$0xff]
        %v280 = vld [vmem:[%s243 + $0xc8] sm:$0xff]
        %v281 = vld [vmem:[%s243 + $0xd0] sm:$0xff]
        %v282 = vld [vmem:[%s243 + $0xd8] sm:$0xff]
        %v283 = vld [vmem:[%s243 + $0xe0] sm:$0xff]
        %v284 = vld [vmem:[%s243 + $0xe8] sm:$0xff]
        %v285 = vld [vmem:[%s243 + $0xf0] sm:$0xff]
        %v286 = vld [vmem:[%s243 + $0xf8] sm:$0xff]
        %v287 = vld [vmem:[%s243 + $0x100] sm:$0xff]
        %v288 = vld [vmem:[%s243 + $0x108] sm:$0xff]
        %v289 = vld [vmem:[%s243 + $0x110] sm:$0xff]
        %v290 = vld [vmem:[%s243 + $0x118] sm:$0xff]
        %v291 = vld [vmem:[%s243 + $0x120] sm:$0xff]
        %v292 = vld [vmem:[%s243 + $0x128] sm:$0xff]
        %v293 = vld [vmem:[%s243 + $0x130] sm:$0xff]
        %v294 = vld [vmem:[%s243 + $0x138] sm:$0xff]
        %v295 = vld [vmem:[%s243 + $0x140] sm:$0xff]
        %v296 = vld [vmem:[%s243 + $0x148] sm:$0xff]
        %v297 = vld [vmem:[%s243 + $0x150] sm:$0xff]
        %v298 = vld [vmem:[%s243 + $0x158] sm:$0xff]
        %v299 = vld [vmem:[%s243 + $0x160] sm:$0xff]
        %v300 = vld [vmem:[%s243 + $0x168] sm:$0xff]
        %v301 = vld [vmem:[%s243 + $0x170] sm:$0xff]
        %v302 = vld [vmem:[%s243 + $0x178] sm:$0xff]
        %v303 = vld [vmem:[%s243 + $0x180] sm:$0xff]
        %v304 = vld [vmem:[%s243 + $0x188] sm:$0xff]
        %v305 = vld [vmem:[%s243 + $0x190] sm:$0xff]
        %v306 = vld [vmem:[%s243 + $0x198] sm:$0xff]
        %v307 = vld [vmem:[%s243 + $0x1a0] sm:$0xff]
        %v308 = vld [vmem:[%s243 + $0x1a8] sm:$0xff]
        %v309 = vld [vmem:[%s243 + $0x1b0] sm:$0xff]
        %v310 = vld [vmem:[%s243 + $0x1b8] sm:$0xff]
        %v311 = vld [vmem:[%s243 + $0x1c0] sm:$0xff]
        %v312 = vld [vmem:[%s243 + $0x1c8] sm:$0xff]
        %v313 = vld [vmem:[%s243 + $0x1d0] sm:$0xff]
        %v314 = vld [vmem:[%s243 + $0x1d8] sm:$0xff]
        %v315 = vld [vmem:[%s243 + $0x1e0] sm:$0xff]
        %v316 = vld [vmem:[%s243 + $0x1e8] sm:$0xff]
        %v317 = vld [vmem:[%s243 + $0x1f0] sm:$0xff]
        %v318 = vld [vmem:[%s243 + $0x1f8] sm:$0xff]
        %v319 = vld [vmem:[%s243 + $0x200] sm:$0xff]
        %v320 = vld [vmem:[%s243 + $0x208] sm:$0xff]
        %v321 = vld [vmem:[%s243 + $0x210] sm:$0xff]
        %v322 = vld [vmem:[%s243 + $0x218] sm:$0xff]
        %v323 = vld [vmem:[%s243 + $0x220] sm:$0xff]
        %v324 = vld [vmem:[%s243 + $0x228] sm:$0xff]
        %v325 = vld [vmem:[%s243 + $0x230] sm:$0xff]
        %v326 = vld [vmem:[%s243 + $0x238] sm:$0xff]
        %v327 = vld [vmem:[%s243 + $0x240] sm:$0xff]
        %v328 = vld [vmem:[%s243 + $0x248] sm:$0xff]
        %v329 = vld [vmem:[%s243 + $0x250] sm:$0xff]
        %v330 = vld [vmem:[%s243 + $0x258] sm:$0xff]
        %v331 = vld [vmem:[%s243 + $0x260] sm:$0xff]
        %v332 = vld [vmem:[%s243 + $0x268] sm:$0xff]
        %p333 = scmp.eq.s32.totalorder %s96, 0
        // Predicated region
        $region73: #{tpu_custom_call.1} parent=11 // pred_check
          %p334 = pneg %p333
        $region74: #{tpu_custom_call.1} parent=11 // pred_check_branch
          %336 = sbr.rel (%p334) target = $region76
        $region75: #{tpu_custom_call.1} parent=11 // pred_region
          %v337 = vlog2.pop %v255
          %v338 = vmul.f32 %v337, 0.6931472
          %v339 = vlog2.pop %v256
          %v340 = vmul.f32 %v339, 0.6931472
          %v341 = vlog2.pop %v257
          %v342 = vmul.f32 %v341, 0.6931472
          %v343 = vlog2.pop %v258
          %v344 = vmul.f32 %v343, 0.6931472
          %v345 = vlog2.pop %v259
          %v346 = vmul.f32 %v345, 0.6931472
          %v347 = vlog2.pop %v260
          %v348 = vmul.f32 %v347, 0.6931472
          %v349 = vlog2.pop %v261
          %v350 = vmul.f32 %v349, 0.6931472
          %v351 = vlog2.pop %v262
          %v352 = vmul.f32 %v351, 0.6931472
          %v353 = vlog2.pop %v263
          %v354 = vmul.f32 %v353, 0.6931472
          %v355 = vlog2.pop %v264
          %v356 = vmul.f32 %v355, 0.6931472
          %v357 = vlog2.pop %v265
          %v358 = vmul.f32 %v357, 0.6931472
          %v359 = vlog2.pop %v266
          %v360 = vmul.f32 %v359, 0.6931472
          %v361 = vlog2.pop %v267
          %v362 = vmul.f32 %v361, 0.6931472
          %v363 = vlog2.pop %v268
          %v364 = vmul.f32 %v363, 0.6931472
          %v365 = vlog2.pop %v269
          %v366 = vmul.f32 %v365, 0.6931472
          %v367 = vlog2.pop %v270
          %v368 = vmul.f32 %v367, 0.6931472
          %v369 = vlog2.pop %v271
          %v370 = vmul.f32 %v369, 0.6931472
          %v371 = vlog2.pop %v272
          %v372 = vmul.f32 %v371, 0.6931472
          %v373 = vlog2.pop %v273
          %v374 = vmul.f32 %v373, 0.6931472
          %v375 = vlog2.pop %v274
          %v376 = vmul.f32 %v375, 0.6931472
          %v377 = vlog2.pop %v275
          %v378 = vmul.f32 %v377, 0.6931472
          %v379 = vlog2.pop %v276
          %v380 = vmul.f32 %v379, 0.6931472
          %v381 = vlog2.pop %v277
          %v382 = vmul.f32 %v381, 0.6931472
          %v383 = vlog2.pop %v278
          %v384 = vmul.f32 %v383, 0.6931472
          %v385 = vlog2.pop %v279
          %v386 = vmul.f32 %v385, 0.6931472
          %v387 = vlog2.pop %v280
          %v388 = vmul.f32 %v387, 0.6931472
          %v389 = vlog2.pop %v281
          %v390 = vmul.f32 %v389, 0.6931472
          %v391 = vlog2.pop %v282
          %v392 = vmul.f32 %v391, 0.6931472
          %v393 = vlog2.pop %v283
          %v394 = vmul.f32 %v393, 0.6931472
          %v395 = vlog2.pop %v284
          %v396 = vmul.f32 %v395, 0.6931472
          %v397 = vlog2.pop %v285
          %v398 = vmul.f32 %v397, 0.6931472
          %v399 = vlog2.pop %v286
          %v400 = vmul.f32 %v399, 0.6931472
          %v401 = vlog2.pop %v287
          %v402 = vmul.f32 %v401, 0.6931472
          %v403 = vlog2.pop %v288
          %v404 = vmul.f32 %v403, 0.6931472
          %v405 = vlog2.pop %v289
          %v406 = vmul.f32 %v405, 0.6931472
          %v407 = vlog2.pop %v290
          %v408 = vmul.f32 %v407, 0.6931472
          %v409 = vlog2.pop %v291
          %v410 = vmul.f32 %v409, 0.6931472
          %v411 = vlog2.pop %v292
          %v412 = vmul.f32 %v411, 0.6931472
          %v413 = vlog2.pop %v293
          %v414 = vmul.f32 %v413, 0.6931472
          %v415 = vlog2.pop %v294
          %v416 = vmul.f32 %v415, 0.6931472
          %v417 = vlog2.pop %v295
          %v418 = vmul.f32 %v417, 0.6931472
          %v419 = vlog2.pop %v296
          %v420 = vmul.f32 %v419, 0.6931472
          %v421 = vlog2.pop %v297
          %v422 = vmul.f32 %v421, 0.6931472
          %v423 = vlog2.pop %v298
          %v424 = vmul.f32 %v423, 0.6931472
          %v425 = vlog2.pop %v299
          %v426 = vmul.f32 %v425, 0.6931472
          %v427 = vlog2.pop %v300
          %v428 = vmul.f32 %v427, 0.6931472
          %v429 = vlog2.pop %v301
          %v430 = vmul.f32 %v429, 0.6931472
          %v431 = vlog2.pop %v302
          %v432 = vmul.f32 %v431, 0.6931472
          %v433 = vlog2.pop %v303
          %v434 = vmul.f32 %v433, 0.6931472
          %v435 = vlog2.pop %v304
          %v436 = vmul.f32 %v435, 0.6931472
          %v437 = vlog2.pop %v305
          %v438 = vmul.f32 %v437, 0.6931472
          %v439 = vlog2.pop %v306
          %v440 = vmul.f32 %v439, 0.6931472
          %v441 = vlog2.pop %v307
          %v442 = vmul.f32 %v441, 0.6931472
          %v443 = vlog2.pop %v308
          %v444 = vmul.f32 %v443, 0.6931472
          %v445 = vlog2.pop %v309
          %v446 = vmul.f32 %v445, 0.6931472
          %v447 = vlog2.pop %v310
          %v448 = vmul.f32 %v447, 0.6931472
          %v449 = vlog2.pop %v311
          %v450 = vmul.f32 %v449, 0.6931472
          %v451 = vlog2.pop %v312
          %v452 = vmul.f32 %v451, 0.6931472
          %v453 = vlog2.pop %v313
          %v454 = vmul.f32 %v453, 0.6931472
          %v455 = vlog2.pop %v314
          %v456 = vmul.f32 %v455, 0.6931472
          %v457 = vlog2.pop %v315
          %v458 = vmul.f32 %v457, 0.6931472
          %v459 = vlog2.pop %v316
          %v460 = vmul.f32 %v459, 0.6931472
          %v461 = vlog2.pop %v317
          %v462 = vmul.f32 %v461, 0.6931472
          %v463 = vlog2.pop %v318
          %v464 = vmul.f32 %v463, 0.6931472
          %v465 = vlog2.pop %v319
          %v466 = vmul.f32 %v465, 0.6931472
          %v467 = vlog2.pop %v320
          %v468 = vmul.f32 %v467, 0.6931472
          %v469 = vlog2.pop %v321
          %v470 = vmul.f32 %v469, 0.6931472
          %v471 = vlog2.pop %v322
          %v472 = vmul.f32 %v471, 0.6931472
          %v473 = vlog2.pop %v323
          %v474 = vmul.f32 %v473, 0.6931472
          %v475 = vlog2.pop %v324
          %v476 = vmul.f32 %v475, 0.6931472
          %v477 = vlog2.pop %v325
          %v478 = vmul.f32 %v477, 0.6931472
          %v479 = vlog2.pop %v326
          %v480 = vmul.f32 %v479, 0.6931472
          %v481 = vlog2.pop %v327
          %v482 = vmul.f32 %v481, 0.6931472
          %v483 = vlog2.pop %v328
          %v484 = vmul.f32 %v483, 0.6931472
          %v485 = vlog2.pop %v329
          %v486 = vmul.f32 %v485, 0.6931472
          %v487 = vlog2.pop %v330
          %v488 = vmul.f32 %v487, 0.6931472
          %v489 = vlog2.pop %v331
          %v490 = vmul.f32 %v489, 0.6931472
          %v491 = vlog2.pop %v332
          %v492 = vmul.f32 %v491, 0.6931472
          %p493 = scmp.eq.s32.totalorder %s97, 0
          // Predicated region
          $region77: #{tpu_custom_call.1} parent=75 // pred_check
            %p494 = pneg %p493
          $region78: #{tpu_custom_call.1} parent=75 // pred_check_branch
            %496 = sbr.rel (%p494) target = $region80
          $region79: #{tpu_custom_call.1} parent=75 // pred_region
            %v497 = vld [vmem:[#allocation6] sm:$0xff]
            %v498 = vadd.f32 %v338, %v340
            %v499 = vadd.f32 %v498, %v342
            %v500 = vadd.f32 %v499, %v344
            %v501 = vadd.f32 %v500, %v346
            %v502 = vadd.f32 %v501, %v348
            %v503 = vadd.f32 %v502, %v350
            %v504 = vadd.f32 %v503, %v352
            %v505 = vadd.f32 %v504, %v354
            %v506 = vadd.f32 %v505, %v356
            %v507 = vadd.f32 %v506, %v358
            %v508 = vadd.f32 %v507, %v360
            %v509 = vadd.f32 %v508, %v362
            %v510 = vadd.f32 %v509, %v364
            %v511 = vadd.f32 %v510, %v366
            %v512 = vadd.f32 %v511, %v368
            %v513 = vadd.f32 %v512, %v370
            %v514 = vadd.f32 %v513, %v372
            %v515 = vadd.f32 %v514, %v374
            %v516 = vadd.f32 %v515, %v376
            %v517 = vadd.f32 %v516, %v378
            %v518 = vadd.f32 %v517, %v380
            %v519 = vadd.f32 %v518, %v382
            %v520 = vadd.f32 %v519, %v384
            %v521 = vadd.f32 %v520, %v386
            %v522 = vadd.f32 %v521, %v388
            %v523 = vadd.f32 %v522, %v390
            %v524 = vadd.f32 %v523, %v392
            %v525 = vadd.f32 %v524, %v394
            %v526 = vadd.f32 %v525, %v396
            %v527 = vadd.f32 %v526, %v398
            %v528 = vadd.f32 %v527, %v400
            %v529 = vadd.f32 %v528, %v402
            %v530 = vadd.f32 %v529, %v404
            %v531 = vadd.f32 %v530, %v406
            %v532 = vadd.f32 %v531, %v408
            %v533 = vadd.f32 %v532, %v410
            %v534 = vadd.f32 %v533, %v412
            %v535 = vadd.f32 %v534, %v414
            %v536 = vadd.f32 %v535, %v416
            %v537 = vadd.f32 %v536, %v418
            %v538 = vadd.f32 %v537, %v420
            %v539 = vadd.f32 %v538, %v422
            %v540 = vadd.f32 %v539, %v424
            %v541 = vadd.f32 %v540, %v426
            %v542 = vadd.f32 %v541, %v428
            %v543 = vadd.f32 %v542, %v430
            %v544 = vadd.f32 %v543, %v432
            %v545 = vadd.f32 %v544, %v434
            %v546 = vadd.f32 %v545, %v436
            %v547 = vadd.f32 %v546, %v438
            %v548 = vadd.f32 %v547, %v440
            %v549 = vadd.f32 %v548, %v442
            %v550 = vadd.f32 %v549, %v444
            %v551 = vadd.f32 %v550, %v446
            %v552 = vadd.f32 %v551, %v448
            %v553 = vadd.f32 %v552, %v450
            %v554 = vadd.f32 %v553, %v452
            %v555 = vadd.f32 %v554, %v454
            %v556 = vadd.f32 %v555, %v456
            %v557 = vadd.f32 %v556, %v458
            %v558 = vadd.f32 %v557, %v460
            %v559 = vadd.f32 %v558, %v462
            %v560 = vadd.f32 %v559, %v464
            %v561 = vadd.f32 %v560, %v466
            %v562 = vadd.f32 %v561, %v468
            %v563 = vadd.f32 %v562, %v470
            %v564 = vadd.f32 %v563, %v472
            %v565 = vadd.f32 %v564, %v474
            %v566 = vadd.f32 %v565, %v476
            %v567 = vadd.f32 %v566, %v478
            %v568 = vadd.f32 %v567, %v480
            %v569 = vadd.f32 %v568, %v482
            %v570 = vadd.f32 %v569, %v484
            %v571 = vadd.f32 %v570, %v486
            %v572 = vadd.f32 %v571, %v488
            %v573 = vadd.f32 %v572, %v490
            %v574 = vadd.f32 %v573, %v492
            %v575 = vstv %s98
            %v576 = vmul.f32 %v575, %v574
            %v577 = vadd.f32 %v497, %v576
            %578 = vst [vmem:[#allocation6] sm:$0xff] %v577
          $region80: #{tpu_custom_call.1} parent=75 // pred_fallthru
            _
          %p579 = scmp.gt.s32.totalorder %s97, 0
          // Predicated region
          $region81: #{tpu_custom_call.1} parent=75 // pred_check
            %p580 = pneg %p579
          $region82: #{tpu_custom_call.1} parent=75 // pred_check_branch
            %582 = sbr.rel (%p580) target = $region84
          $region83: #{tpu_custom_call.1} parent=75 // pred_region
            %v583 = vlaneseq
            %v584 = vshrl.u32 %v583, 7
            %v585 = vadd.s32 %v584, 8
            %v586 = vadd.s32 %v584, 16
            %v587 = vadd.s32 %v584, 24
            %v588 = vadd.s32 %v584, 32
            %v589 = vadd.s32 %v584, 40
            %v590 = vadd.s32 %v584, 48
            %v591 = vadd.s32 %v584, 56
            %v592 = vadd.s32 %v584, 64
            %v593 = vadd.s32 %v584, 72
            %v594 = vadd.s32 %v584, 80
            %v595 = vadd.s32 %v584, 88
            %v596 = vadd.s32 %v584, 96
            %v597 = vadd.s32 %v584, 104
            %v598 = vadd.s32 %v584, 112
            %v599 = vadd.s32 %v584, 120
            %v600 = vadd.s32 %v584, 128
            %v601 = vadd.s32 %v584, 136
            %v602 = vadd.s32 %v584, 144
            %v603 = vadd.s32 %v584, 152
            %v604 = vadd.s32 %v584, 160
            %v605 = vadd.s32 %v584, 168
            %v606 = vadd.s32 %v584, 176
            %v607 = vadd.s32 %v584, 184
            %v608 = vadd.s32 %v584, 192
            %v609 = vadd.s32 %v584, 200
            %v610 = vadd.s32 %v584, 208
            %v611 = vadd.s32 %v584, 216
            %v612 = vadd.s32 %v584, 224
            %v613 = vadd.s32 %v584, 232
            %v614 = vadd.s32 %v584, 240
            %v615 = vadd.s32 %v584, 248
            %v616 = vadd.s32 %v584, 256
            %v617 = vadd.s32 %v584, 264
            %v618 = vadd.s32 %v584, 272
            %v619 = vadd.s32 %v584, 280
            %v620 = vadd.s32 %v584, 288
            %v621 = vadd.s32 %v584, 296
            %v622 = vadd.s32 %v584, 304
            %v623 = vadd.s32 %v584, 312
            %v624 = vadd.s32 %v584, 320
            %v625 = vadd.s32 %v584, 328
            %v626 = vadd.s32 %v584, 336
            %v627 = vadd.s32 %v584, 344
            %v628 = vadd.s32 %v584, 352
            %v629 = vadd.s32 %v584, 360
            %v630 = vadd.s32 %v584, 368
            %v631 = vadd.s32 %v584, 376
            %v632 = vadd.s32 %v584, 384
            %v633 = vadd.s32 %v584, 392
            %v634 = vadd.s32 %v584, 400
            %v635 = vadd.s32 %v584, 408
            %v636 = vadd.s32 %v584, 416
            %v637 = vadd.s32 %v584, 424
            %v638 = vadd.s32 %v584, 432
            %v639 = vadd.s32 %v584, 440
            %v640 = vadd.s32 %v584, 448
            %v641 = vadd.s32 %v584, 456
            %v642 = vadd.s32 %v584, 464
            %v643 = vadd.s32 %v584, 472
            %v644 = vadd.s32 %v584, 480
            %v645 = vadd.s32 %v584, 488
            %v646 = vadd.s32 %v584, 496
            %v647 = vadd.s32 %v584, 504
            %v648 = vadd.s32 %v584, 512
            %v649 = vadd.s32 %v584, 520
            %v650 = vadd.s32 %v584, 528
            %v651 = vadd.s32 %v584, 536
            %v652 = vadd.s32 %v584, 544
            %v653 = vadd.s32 %v584, 552
            %v654 = vadd.s32 %v584, 560
            %v655 = vadd.s32 %v584, 568
            %v656 = vadd.s32 %v584, 576
            %v657 = vadd.s32 %v584, 584
            %v658 = vadd.s32 %v584, 592
            %v659 = vadd.s32 %v584, 600
            %v660 = vadd.s32 %v584, 608
            %v661 = vadd.s32 %v584, 616
            %v662 = vstv %s97
            %vm663 = vcmp.ge.s32.totalorder %v584, %v662
            %vm664 = vcmp.ge.s32.totalorder %v585, %v662
            %vm665 = vcmp.ge.s32.totalorder %v586, %v662
            %vm666 = vcmp.ge.s32.totalorder %v587, %v662
            %vm667 = vcmp.ge.s32.totalorder %v588, %v662
            %vm668 = vcmp.ge.s32.totalorder %v589, %v662
            %vm669 = vcmp.ge.s32.totalorder %v590, %v662
            %vm670 = vcmp.ge.s32.totalorder %v591, %v662
            %vm671 = vcmp.ge.s32.totalorder %v592, %v662
            %vm672 = vcmp.ge.s32.totalorder %v593, %v662
            %vm673 = vcmp.ge.s32.totalorder %v594, %v662
            %vm674 = vcmp.ge.s32.totalorder %v595, %v662
            %vm675 = vcmp.ge.s32.totalorder %v596, %v662
            %vm676 = vcmp.ge.s32.totalorder %v597, %v662
            %vm677 = vcmp.ge.s32.totalorder %v598, %v662
            %vm678 = vcmp.ge.s32.totalorder %v599, %v662
            %vm679 = vcmp.ge.s32.totalorder %v600, %v662
            %vm680 = vcmp.ge.s32.totalorder %v601, %v662
            %vm681 = vcmp.ge.s32.totalorder %v602, %v662
            %vm682 = vcmp.ge.s32.totalorder %v603, %v662
            %vm683 = vcmp.ge.s32.totalorder %v604, %v662
            %vm684 = vcmp.ge.s32.totalorder %v605, %v662
            %vm685 = vcmp.ge.s32.totalorder %v606, %v662
            %vm686 = vcmp.ge.s32.totalorder %v607, %v662
            %vm687 = vcmp.ge.s32.totalorder %v608, %v662
            %vm688 = vcmp.ge.s32.totalorder %v609, %v662
            %vm689 = vcmp.ge.s32.totalorder %v610, %v662
            %vm690 = vcmp.ge.s32.totalorder %v611, %v662
            %vm691 = vcmp.ge.s32.totalorder %v612, %v662
            %vm692 = vcmp.ge.s32.totalorder %v613, %v662
            %vm693 = vcmp.ge.s32.totalorder %v614, %v662
            %vm694 = vcmp.ge.s32.totalorder %v615, %v662
            %vm695 = vcmp.ge.s32.totalorder %v616, %v662
            %vm696 = vcmp.ge.s32.totalorder %v617, %v662
            %vm697 = vcmp.ge.s32.totalorder %v618, %v662
            %vm698 = vcmp.ge.s32.totalorder %v619, %v662
            %vm699 = vcmp.ge.s32.totalorder %v620, %v662
            %vm700 = vcmp.ge.s32.totalorder %v621, %v662
            %vm701 = vcmp.ge.s32.totalorder %v622, %v662
            %vm702 = vcmp.ge.s32.totalorder %v623, %v662
            %vm703 = vcmp.ge.s32.totalorder %v624, %v662
            %vm704 = vcmp.ge.s32.totalorder %v625, %v662
            %vm705 = vcmp.ge.s32.totalorder %v626, %v662
            %vm706 = vcmp.ge.s32.totalorder %v627, %v662
            %vm707 = vcmp.ge.s32.totalorder %v628, %v662
            %vm708 = vcmp.ge.s32.totalorder %v629, %v662
            %vm709 = vcmp.ge.s32.totalorder %v630, %v662
            %vm710 = vcmp.ge.s32.totalorder %v631, %v662
            %vm711 = vcmp.ge.s32.totalorder %v632, %v662
            %vm712 = vcmp.ge.s32.totalorder %v633, %v662
            %vm713 = vcmp.ge.s32.totalorder %v634, %v662
            %vm714 = vcmp.ge.s32.totalorder %v635, %v662
            %vm715 = vcmp.ge.s32.totalorder %v636, %v662
            %vm716 = vcmp.ge.s32.totalorder %v637, %v662
            %vm717 = vcmp.ge.s32.totalorder %v638, %v662
            %vm718 = vcmp.ge.s32.totalorder %v639, %v662
            %vm719 = vcmp.ge.s32.totalorder %v640, %v662
            %vm720 = vcmp.ge.s32.totalorder %v641, %v662
            %vm721 = vcmp.ge.s32.totalorder %v642, %v662
            %vm722 = vcmp.ge.s32.totalorder %v643, %v662
            %vm723 = vcmp.ge.s32.totalorder %v644, %v662
            %vm724 = vcmp.ge.s32.totalorder %v645, %v662
            %vm725 = vcmp.ge.s32.totalorder %v646, %v662
            %vm726 = vcmp.ge.s32.totalorder %v647, %v662
            %vm727 = vcmp.ge.s32.totalorder %v648, %v662
            %vm728 = vcmp.ge.s32.totalorder %v649, %v662
            %vm729 = vcmp.ge.s32.totalorder %v650, %v662
            %vm730 = vcmp.ge.s32.totalorder %v651, %v662
            %vm731 = vcmp.ge.s32.totalorder %v652, %v662
            %vm732 = vcmp.ge.s32.totalorder %v653, %v662
            %vm733 = vcmp.ge.s32.totalorder %v654, %v662
            %vm734 = vcmp.ge.s32.totalorder %v655, %v662
            %vm735 = vcmp.ge.s32.totalorder %v656, %v662
            %vm736 = vcmp.ge.s32.totalorder %v657, %v662
            %vm737 = vcmp.ge.s32.totalorder %v658, %v662
            %vm738 = vcmp.ge.s32.totalorder %v659, %v662
            %vm739 = vcmp.ge.s32.totalorder %v660, %v662
            %vm740 = vcmp.ge.s32.totalorder %v661, %v662
            %v741 = vsel %vm663, %v338, 0.0
            %v742 = vsel %vm664, %v340, 0.0
            %v743 = vsel %vm665, %v342, 0.0
            %v744 = vsel %vm666, %v344, 0.0
            %v745 = vsel %vm667, %v346, 0.0
            %v746 = vsel %vm668, %v348, 0.0
            %v747 = vsel %vm669, %v350, 0.0
            %v748 = vsel %vm670, %v352, 0.0
            %v749 = vsel %vm671, %v354, 0.0
            %v750 = vsel %vm672, %v356, 0.0
            %v751 = vsel %vm673, %v358, 0.0
            %v752 = vsel %vm674, %v360, 0.0
            %v753 = vsel %vm675, %v362, 0.0
            %v754 = vsel %vm676, %v364, 0.0
            %v755 = vsel %vm677, %v366, 0.0
            %v756 = vsel %vm678, %v368, 0.0
            %v757 = vsel %vm679, %v370, 0.0
            %v758 = vsel %vm680, %v372, 0.0
            %v759 = vsel %vm681, %v374, 0.0
            %v760 = vsel %vm682, %v376, 0.0
            %v761 = vsel %vm683, %v378, 0.0
            %v762 = vsel %vm684, %v380, 0.0
            %v763 = vsel %vm685, %v382, 0.0
            %v764 = vsel %vm686, %v384, 0.0
            %v765 = vsel %vm687, %v386, 0.0
            %v766 = vsel %vm688, %v388, 0.0
            %v767 = vsel %vm689, %v390, 0.0
            %v768 = vsel %vm690, %v392, 0.0
            %v769 = vsel %vm691, %v394, 0.0
            %v770 = vsel %vm692, %v396, 0.0
            %v771 = vsel %vm693, %v398, 0.0
            %v772 = vsel %vm694, %v400, 0.0
            %v773 = vsel %vm695, %v402, 0.0
            %v774 = vsel %vm696, %v404, 0.0
            %v775 = vsel %vm697, %v406, 0.0
            %v776 = vsel %vm698, %v408, 0.0
            %v777 = vsel %vm699, %v410, 0.0
            %v778 = vsel %vm700, %v412, 0.0
            %v779 = vsel %vm701, %v414, 0.0
            %v780 = vsel %vm702, %v416, 0.0
            %v781 = vsel %vm703, %v418, 0.0
            %v782 = vsel %vm704, %v420, 0.0
            %v783 = vsel %vm705, %v422, 0.0
            %v784 = vsel %vm706, %v424, 0.0
            %v785 = vsel %vm707, %v426, 0.0
            %v786 = vsel %vm708, %v428, 0.0
            %v787 = vsel %vm709, %v430, 0.0
            %v788 = vsel %vm710, %v432, 0.0
            %v789 = vsel %vm711, %v434, 0.0
            %v790 = vsel %vm712, %v436, 0.0
            %v791 = vsel %vm713, %v438, 0.0
            %v792 = vsel %vm714, %v440, 0.0
            %v793 = vsel %vm715, %v442, 0.0
            %v794 = vsel %vm716, %v444, 0.0
            %v795 = vsel %vm717, %v446, 0.0
            %v796 = vsel %vm718, %v448, 0.0
            %v797 = vsel %vm719, %v450, 0.0
            %v798 = vsel %vm720, %v452, 0.0
            %v799 = vsel %vm721, %v454, 0.0
            %v800 = vsel %vm722, %v456, 0.0
            %v801 = vsel %vm723, %v458, 0.0
            %v802 = vsel %vm724, %v460, 0.0
            %v803 = vsel %vm725, %v462, 0.0
            %v804 = vsel %vm726, %v464, 0.0
            %v805 = vsel %vm727, %v466, 0.0
            %v806 = vsel %vm728, %v468, 0.0
            %v807 = vsel %vm729, %v470, 0.0
            %v808 = vsel %vm730, %v472, 0.0
            %v809 = vsel %vm731, %v474, 0.0
            %v810 = vsel %vm732, %v476, 0.0
            %v811 = vsel %vm733, %v478, 0.0
            %v812 = vsel %vm734, %v480, 0.0
            %v813 = vsel %vm735, %v482, 0.0
            %v814 = vsel %vm736, %v484, 0.0
            %v815 = vsel %vm737, %v486, 0.0
            %v816 = vsel %vm738, %v488, 0.0
            %v817 = vsel %vm739, %v490, 0.0
            %v818 = vsel %vm740, %v492, 0.0
            %v819 = vld [vmem:[#allocation6] sm:$0xff]
            %v820 = vadd.f32 %v741, %v742
            %v821 = vadd.f32 %v820, %v743
            %v822 = vadd.f32 %v821, %v744
            %v823 = vadd.f32 %v822, %v745
            %v824 = vadd.f32 %v823, %v746
            %v825 = vadd.f32 %v824, %v747
            %v826 = vadd.f32 %v825, %v748
            %v827 = vadd.f32 %v826, %v749
            %v828 = vadd.f32 %v827, %v750
            %v829 = vadd.f32 %v828, %v751
            %v830 = vadd.f32 %v829, %v752
            %v831 = vadd.f32 %v830, %v753
            %v832 = vadd.f32 %v831, %v754
            %v833 = vadd.f32 %v832, %v755
            %v834 = vadd.f32 %v833, %v756
            %v835 = vadd.f32 %v834, %v757
            %v836 = vadd.f32 %v835, %v758
            %v837 = vadd.f32 %v836, %v759
            %v838 = vadd.f32 %v837, %v760
            %v839 = vadd.f32 %v838, %v761
            %v840 = vadd.f32 %v839, %v762
            %v841 = vadd.f32 %v840, %v763
            %v842 = vadd.f32 %v841, %v764
            %v843 = vadd.f32 %v842, %v765
            %v844 = vadd.f32 %v843, %v766
            %v845 = vadd.f32 %v844, %v767
            %v846 = vadd.f32 %v845, %v768
            %v847 = vadd.f32 %v846, %v769
            %v848 = vadd.f32 %v847, %v770
            %v849 = vadd.f32 %v848, %v771
            %v850 = vadd.f32 %v849, %v772
            %v851 = vadd.f32 %v850, %v773
            %v852 = vadd.f32 %v851, %v774
            %v853 = vadd.f32 %v852, %v775
            %v854 = vadd.f32 %v853, %v776
            %v855 = vadd.f32 %v854, %v777
            %v856 = vadd.f32 %v855, %v778
            %v857 = vadd.f32 %v856, %v779
            %v858 = vadd.f32 %v857, %v780
            %v859 = vadd.f32 %v858, %v781
            %v860 = vadd.f32 %v859, %v782
            %v861 = vadd.f32 %v860, %v783
            %v862 = vadd.f32 %v861, %v784
            %v863 = vadd.f32 %v862, %v785
            %v864 = vadd.f32 %v863, %v786
            %v865 = vadd.f32 %v864, %v787
            %v866 = vadd.f32 %v865, %v788
            %v867 = vadd.f32 %v866, %v789
            %v868 = vadd.f32 %v867, %v790
            %v869 = vadd.f32 %v868, %v791
            %v870 = vadd.f32 %v869, %v792
            %v871 = vadd.f32 %v870, %v793
            %v872 = vadd.f32 %v871, %v794
            %v873 = vadd.f32 %v872, %v795
            %v874 = vadd.f32 %v873, %v796
            %v875 = vadd.f32 %v874, %v797
            %v876 = vadd.f32 %v875, %v798
            %v877 = vadd.f32 %v876, %v799
            %v878 = vadd.f32 %v877, %v800
            %v879 = vadd.f32 %v878, %v801
            %v880 = vadd.f32 %v879, %v802
            %v881 = vadd.f32 %v880, %v803
            %v882 = vadd.f32 %v881, %v804
            %v883 = vadd.f32 %v882, %v805
            %v884 = vadd.f32 %v883, %v806
            %v885 = vadd.f32 %v884, %v807
            %v886 = vadd.f32 %v885, %v808
            %v887 = vadd.f32 %v886, %v809
            %v888 = vadd.f32 %v887, %v810
            %v889 = vadd.f32 %v888, %v811
            %v890 = vadd.f32 %v889, %v812
            %v891 = vadd.f32 %v890, %v813
            %v892 = vadd.f32 %v891, %v814
            %v893 = vadd.f32 %v892, %v815
            %v894 = vadd.f32 %v893, %v816
            %v895 = vadd.f32 %v894, %v817
            %v896 = vadd.f32 %v895, %v818
            %v897 = vstv %s98
            %v898 = vmul.f32 %v897, %v896
            %v899 = vadd.f32 %v819, %v898
            %900 = vst [vmem:[#allocation6] sm:$0xff] %v899
          $region84: #{tpu_custom_call.1} parent=75 // pred_fallthru
            _
        $region76: #{tpu_custom_call.1} parent=11 // pred_fallthru
          _
        // Predicated region
        $region85: #{tpu_custom_call.1} parent=11 // pred_check
          %p901 = pneg %p248
        $region86: #{tpu_custom_call.1} parent=11 // pred_check_branch
          %903 = sbr.rel (%p901) target = $region88
        $region87: #{tpu_custom_call.1} parent=11 // pred_region
          %s904 = scalar_lea.vmem [#allocation4], %s242
          %v905 = vld [vmem:[%s904] sm:$0xff]
          %v906 = vld [vmem:[%s904 + $0x8] sm:$0xff]
          %v907 = vld [vmem:[%s904 + $0x10] sm:$0xff]
          %v908 = vld [vmem:[%s904 + $0x18] sm:$0xff]
          %v909 = vld [vmem:[%s904 + $0x20] sm:$0xff]
          %v910 = vld [vmem:[%s904 + $0x28] sm:$0xff]
          %v911 = vld [vmem:[%s904 + $0x30] sm:$0xff]
          %v912 = vld [vmem:[%s904 + $0x38] sm:$0xff]
          %v913 = vld [vmem:[%s904 + $0x40] sm:$0xff]
          %v914 = vld [vmem:[%s904 + $0x48] sm:$0xff]
          %v915 = vld [vmem:[%s904 + $0x50] sm:$0xff]
          %v916 = vld [vmem:[%s904 + $0x58] sm:$0xff]
          %v917 = vld [vmem:[%s904 + $0x60] sm:$0xff]
          %v918 = vld [vmem:[%s904 + $0x68] sm:$0xff]
          %v919 = vld [vmem:[%s904 + $0x70] sm:$0xff]
          %v920 = vld [vmem:[%s904 + $0x78] sm:$0xff]
          %v921 = vld [vmem:[%s904 + $0x80] sm:$0xff]
          %v922 = vld [vmem:[%s904 + $0x88] sm:$0xff]
          %v923 = vld [vmem:[%s904 + $0x90] sm:$0xff]
          %v924 = vld [vmem:[%s904 + $0x98] sm:$0xff]
          %v925 = vld [vmem:[%s904 + $0xa0] sm:$0xff]
          %v926 = vld [vmem:[%s904 + $0xa8] sm:$0xff]
          %v927 = vld [vmem:[%s904 + $0xb0] sm:$0xff]
          %v928 = vld [vmem:[%s904 + $0xb8] sm:$0xff]
          %v929 = vld [vmem:[%s904 + $0xc0] sm:$0xff]
          %v930 = vld [vmem:[%s904 + $0xc8] sm:$0xff]
          %v931 = vld [vmem:[%s904 + $0xd0] sm:$0xff]
          %v932 = vld [vmem:[%s904 + $0xd8] sm:$0xff]
          %v933 = vld [vmem:[%s904 + $0xe0] sm:$0xff]
          %v934 = vld [vmem:[%s904 + $0xe8] sm:$0xff]
          %v935 = vld [vmem:[%s904 + $0xf0] sm:$0xff]
          %v936 = vld [vmem:[%s904 + $0xf8] sm:$0xff]
          %v937 = vld [vmem:[%s904 + $0x100] sm:$0xff]
          %v938 = vld [vmem:[%s904 + $0x108] sm:$0xff]
          %v939 = vld [vmem:[%s904 + $0x110] sm:$0xff]
          %v940 = vld [vmem:[%s904 + $0x118] sm:$0xff]
          %v941 = vld [vmem:[%s904 + $0x120] sm:$0xff]
          %v942 = vld [vmem:[%s904 + $0x128] sm:$0xff]
          %v943 = vld [vmem:[%s904 + $0x130] sm:$0xff]
          %v944 = vld [vmem:[%s904 + $0x138] sm:$0xff]
          %v945 = vld [vmem:[%s904 + $0x140] sm:$0xff]
          %v946 = vld [vmem:[%s904 + $0x148] sm:$0xff]
          %v947 = vld [vmem:[%s904 + $0x150] sm:$0xff]
          %v948 = vld [vmem:[%s904 + $0x158] sm:$0xff]
          %v949 = vld [vmem:[%s904 + $0x160] sm:$0xff]
          %v950 = vld [vmem:[%s904 + $0x168] sm:$0xff]
          %v951 = vld [vmem:[%s904 + $0x170] sm:$0xff]
          %v952 = vld [vmem:[%s904 + $0x178] sm:$0xff]
          %v953 = vld [vmem:[%s904 + $0x180] sm:$0xff]
          %v954 = vld [vmem:[%s904 + $0x188] sm:$0xff]
          %v955 = vld [vmem:[%s904 + $0x190] sm:$0xff]
          %v956 = vld [vmem:[%s904 + $0x198] sm:$0xff]
          %v957 = vld [vmem:[%s904 + $0x1a0] sm:$0xff]
          %v958 = vld [vmem:[%s904 + $0x1a8] sm:$0xff]
          %v959 = vld [vmem:[%s904 + $0x1b0] sm:$0xff]
          %v960 = vld [vmem:[%s904 + $0x1b8] sm:$0xff]
          %v961 = vld [vmem:[%s904 + $0x1c0] sm:$0xff]
          %v962 = vld [vmem:[%s904 + $0x1c8] sm:$0xff]
          %v963 = vld [vmem:[%s904 + $0x1d0] sm:$0xff]
          %v964 = vld [vmem:[%s904 + $0x1d8] sm:$0xff]
          %v965 = vld [vmem:[%s904 + $0x1e0] sm:$0xff]
          %v966 = vld [vmem:[%s904 + $0x1e8] sm:$0xff]
          %v967 = vld [vmem:[%s904 + $0x1f0] sm:$0xff]
          %v968 = vld [vmem:[%s904 + $0x1f8] sm:$0xff]
          %v969 = vld [vmem:[%s904 + $0x200] sm:$0xff]
          %v970 = vld [vmem:[%s904 + $0x208] sm:$0xff]
          %v971 = vld [vmem:[%s904 + $0x210] sm:$0xff]
          %v972 = vld [vmem:[%s904 + $0x218] sm:$0xff]
          %v973 = vld [vmem:[%s904 + $0x220] sm:$0xff]
          %v974 = vld [vmem:[%s904 + $0x228] sm:$0xff]
          %v975 = vld [vmem:[%s904 + $0x230] sm:$0xff]
          %v976 = vld [vmem:[%s904 + $0x238] sm:$0xff]
          %v977 = vld [vmem:[%s904 + $0x240] sm:$0xff]
          %v978 = vld [vmem:[%s904 + $0x248] sm:$0xff]
          %v979 = vld [vmem:[%s904 + $0x250] sm:$0xff]
          %v980 = vld [vmem:[%s904 + $0x258] sm:$0xff]
          %v981 = vld [vmem:[%s904 + $0x260] sm:$0xff]
          %v982 = vld [vmem:[%s904 + $0x268] sm:$0xff]
          %v983 = vsub.f32 %v255, %v905
          %v984 = vsub.f32 %v256, %v906
          %v985 = vsub.f32 %v257, %v907
          %v986 = vsub.f32 %v258, %v908
          %v987 = vsub.f32 %v259, %v909
          %v988 = vsub.f32 %v260, %v910
          %v989 = vsub.f32 %v261, %v911
          %v990 = vsub.f32 %v262, %v912
          %v991 = vsub.f32 %v263, %v913
          %v992 = vsub.f32 %v264, %v914
          %v993 = vsub.f32 %v265, %v915
          %v994 = vsub.f32 %v266, %v916
          %v995 = vsub.f32 %v267, %v917
          %v996 = vsub.f32 %v268, %v918
          %v997 = vsub.f32 %v269, %v919
          %v998 = vsub.f32 %v270, %v920
          %v999 = vsub.f32 %v271, %v921
          %v1000 = vsub.f32 %v272, %v922
          %v1001 = vsub.f32 %v273, %v923
          %v1002 = vsub.f32 %v274, %v924
          %v1003 = vsub.f32 %v275, %v925
          %v1004 = vsub.f32 %v276, %v926
          %v1005 = vsub.f32 %v277, %v927
          %v1006 = vsub.f32 %v278, %v928
          %v1007 = vsub.f32 %v279, %v929
          %v1008 = vsub.f32 %v280, %v930
          %v1009 = vsub.f32 %v281, %v931
          %v1010 = vsub.f32 %v282, %v932
          %v1011 = vsub.f32 %v283, %v933
          %v1012 = vsub.f32 %v284, %v934
          %v1013 = vsub.f32 %v285, %v935
          %v1014 = vsub.f32 %v286, %v936
          %v1015 = vsub.f32 %v287, %v937
          %v1016 = vsub.f32 %v288, %v938
          %v1017 = vsub.f32 %v289, %v939
          %v1018 = vsub.f32 %v290, %v940
          %v1019 = vsub.f32 %v291, %v941
          %v1020 = vsub.f32 %v292, %v942
          %v1021 = vsub.f32 %v293, %v943
          %v1022 = vsub.f32 %v294, %v944
          %v1023 = vsub.f32 %v295, %v945
          %v1024 = vsub.f32 %v296, %v946
          %v1025 = vsub.f32 %v297, %v947
          %v1026 = vsub.f32 %v298, %v948
          %v1027 = vsub.f32 %v299, %v949
          %v1028 = vsub.f32 %v300, %v950
          %v1029 = vsub.f32 %v301, %v951
          %v1030 = vsub.f32 %v302, %v952
          %v1031 = vsub.f32 %v303, %v953
          %v1032 = vsub.f32 %v304, %v954
          %v1033 = vsub.f32 %v305, %v955
          %v1034 = vsub.f32 %v306, %v956
          %v1035 = vsub.f32 %v307, %v957
          %v1036 = vsub.f32 %v308, %v958
          %v1037 = vsub.f32 %v309, %v959
          %v1038 = vsub.f32 %v310, %v960
          %v1039 = vsub.f32 %v311, %v961
          %v1040 = vsub.f32 %v312, %v962
          %v1041 = vsub.f32 %v313, %v963
          %v1042 = vsub.f32 %v314, %v964
          %v1043 = vsub.f32 %v315, %v965
          %v1044 = vsub.f32 %v316, %v966
          %v1045 = vsub.f32 %v317, %v967
          %v1046 = vsub.f32 %v318, %v968
          %v1047 = vsub.f32 %v319, %v969
          %v1048 = vsub.f32 %v320, %v970
          %v1049 = vsub.f32 %v321, %v971
          %v1050 = vsub.f32 %v322, %v972
          %v1051 = vsub.f32 %v323, %v973
          %v1052 = vsub.f32 %v324, %v974
          %v1053 = vsub.f32 %v325, %v975
          %v1054 = vsub.f32 %v326, %v976
          %v1055 = vsub.f32 %v327, %v977
          %v1056 = vsub.f32 %v328, %v978
          %v1057 = vsub.f32 %v329, %v979
          %v1058 = vsub.f32 %v330, %v980
          %v1059 = vsub.f32 %v331, %v981
          %v1060 = vsub.f32 %v332, %v982
          %v1061 = vmul.f32 %v983, %v983
          %v1062 = vmul.f32 %v984, %v984
          %v1063 = vmul.f32 %v985, %v985
          %v1064 = vmul.f32 %v986, %v986
          %v1065 = vmul.f32 %v987, %v987
          %v1066 = vmul.f32 %v988, %v988
          %v1067 = vmul.f32 %v989, %v989
          %v1068 = vmul.f32 %v990, %v990
          %v1069 = vmul.f32 %v991, %v991
          %v1070 = vmul.f32 %v992, %v992
          %v1071 = vmul.f32 %v993, %v993
          %v1072 = vmul.f32 %v994, %v994
          %v1073 = vmul.f32 %v995, %v995
          %v1074 = vmul.f32 %v996, %v996
          %v1075 = vmul.f32 %v997, %v997
          %v1076 = vmul.f32 %v998, %v998
          %v1077 = vmul.f32 %v999, %v999
          %v1078 = vmul.f32 %v1000, %v1000
          %v1079 = vmul.f32 %v1001, %v1001
          %v1080 = vmul.f32 %v1002, %v1002
          %v1081 = vmul.f32 %v1003, %v1003
          %v1082 = vmul.f32 %v1004, %v1004
          %v1083 = vmul.f32 %v1005, %v1005
          %v1084 = vmul.f32 %v1006, %v1006
          %v1085 = vmul.f32 %v1007, %v1007
          %v1086 = vmul.f32 %v1008, %v1008
          %v1087 = vmul.f32 %v1009, %v1009
          %v1088 = vmul.f32 %v1010, %v1010
          %v1089 = vmul.f32 %v1011, %v1011
          %v1090 = vmul.f32 %v1012, %v1012
          %v1091 = vmul.f32 %v1013, %v1013
          %v1092 = vmul.f32 %v1014, %v1014
          %v1093 = vmul.f32 %v1015, %v1015
          %v1094 = vmul.f32 %v1016, %v1016
          %v1095 = vmul.f32 %v1017, %v1017
          %v1096 = vmul.f32 %v1018, %v1018
          %v1097 = vmul.f32 %v1019, %v1019
          %v1098 = vmul.f32 %v1020, %v1020
          %v1099 = vmul.f32 %v1021, %v1021
          %v1100 = vmul.f32 %v1022, %v1022
          %v1101 = vmul.f32 %v1023, %v1023
          %v1102 = vmul.f32 %v1024, %v1024
          %v1103 = vmul.f32 %v1025, %v1025
          %v1104 = vmul.f32 %v1026, %v1026
          %v1105 = vmul.f32 %v1027, %v1027
          %v1106 = vmul.f32 %v1028, %v1028
          %v1107 = vmul.f32 %v1029, %v1029
          %v1108 = vmul.f32 %v1030, %v1030
          %v1109 = vmul.f32 %v1031, %v1031
          %v1110 = vmul.f32 %v1032, %v1032
          %v1111 = vmul.f32 %v1033, %v1033
          %v1112 = vmul.f32 %v1034, %v1034
          %v1113 = vmul.f32 %v1035, %v1035
          %v1114 = vmul.f32 %v1036, %v1036
          %v1115 = vmul.f32 %v1037, %v1037
          %v1116 = vmul.f32 %v1038, %v1038
          %v1117 = vmul.f32 %v1039, %v1039
          %v1118 = vmul.f32 %v1040, %v1040
          %v1119 = vmul.f32 %v1041, %v1041
          %v1120 = vmul.f32 %v1042, %v1042
          %v1121 = vmul.f32 %v1043, %v1043
          %v1122 = vmul.f32 %v1044, %v1044
          %v1123 = vmul.f32 %v1045, %v1045
          %v1124 = vmul.f32 %v1046, %v1046
          %v1125 = vmul.f32 %v1047, %v1047
          %v1126 = vmul.f32 %v1048, %v1048
          %v1127 = vmul.f32 %v1049, %v1049
          %v1128 = vmul.f32 %v1050, %v1050
          %v1129 = vmul.f32 %v1051, %v1051
          %v1130 = vmul.f32 %v1052, %v1052
          %v1131 = vmul.f32 %v1053, %v1053
          %v1132 = vmul.f32 %v1054, %v1054
          %v1133 = vmul.f32 %v1055, %v1055
          %v1134 = vmul.f32 %v1056, %v1056
          %v1135 = vmul.f32 %v1057, %v1057
          %v1136 = vmul.f32 %v1058, %v1058
          %v1137 = vmul.f32 %v1059, %v1059
          %v1138 = vmul.f32 %v1060, %v1060
          %p1139 = scmp.eq.s32.totalorder %s97, 0
          // Predicated region
          $region89: #{tpu_custom_call.1} parent=87 // pred_check
            %p1140 = pneg %p1139
          $region90: #{tpu_custom_call.1} parent=87 // pred_check_branch
            %1142 = sbr.rel (%p1140) target = $region92
          $region91: #{tpu_custom_call.1} parent=87 // pred_region
            %v1143 = vld [vmem:[#allocation7] sm:$0xff]
            %v1144 = vadd.f32 %v1061, %v1062
            %v1145 = vadd.f32 %v1144, %v1063
            %v1146 = vadd.f32 %v1145, %v1064
            %v1147 = vadd.f32 %v1146, %v1065
            %v1148 = vadd.f32 %v1147, %v1066
            %v1149 = vadd.f32 %v1148, %v1067
            %v1150 = vadd.f32 %v1149, %v1068
            %v1151 = vadd.f32 %v1150, %v1069
            %v1152 = vadd.f32 %v1151, %v1070
            %v1153 = vadd.f32 %v1152, %v1071
            %v1154 = vadd.f32 %v1153, %v1072
            %v1155 = vadd.f32 %v1154, %v1073
            %v1156 = vadd.f32 %v1155, %v1074
            %v1157 = vadd.f32 %v1156, %v1075
            %v1158 = vadd.f32 %v1157, %v1076
            %v1159 = vadd.f32 %v1158, %v1077
            %v1160 = vadd.f32 %v1159, %v1078
            %v1161 = vadd.f32 %v1160, %v1079
            %v1162 = vadd.f32 %v1161, %v1080
            %v1163 = vadd.f32 %v1162, %v1081
            %v1164 = vadd.f32 %v1163, %v1082
            %v1165 = vadd.f32 %v1164, %v1083
            %v1166 = vadd.f32 %v1165, %v1084
            %v1167 = vadd.f32 %v1166, %v1085
            %v1168 = vadd.f32 %v1167, %v1086
            %v1169 = vadd.f32 %v1168, %v1087
            %v1170 = vadd.f32 %v1169, %v1088
            %v1171 = vadd.f32 %v1170, %v1089
            %v1172 = vadd.f32 %v1171, %v1090
            %v1173 = vadd.f32 %v1172, %v1091
            %v1174 = vadd.f32 %v1173, %v1092
            %v1175 = vadd.f32 %v1174, %v1093
            %v1176 = vadd.f32 %v1175, %v1094
            %v1177 = vadd.f32 %v1176, %v1095
            %v1178 = vadd.f32 %v1177, %v1096
            %v1179 = vadd.f32 %v1178, %v1097
            %v1180 = vadd.f32 %v1179, %v1098
            %v1181 = vadd.f32 %v1180, %v1099
            %v1182 = vadd.f32 %v1181, %v1100
            %v1183 = vadd.f32 %v1182, %v1101
            %v1184 = vadd.f32 %v1183, %v1102
            %v1185 = vadd.f32 %v1184, %v1103
            %v1186 = vadd.f32 %v1185, %v1104
            %v1187 = vadd.f32 %v1186, %v1105
            %v1188 = vadd.f32 %v1187, %v1106
            %v1189 = vadd.f32 %v1188, %v1107
            %v1190 = vadd.f32 %v1189, %v1108
            %v1191 = vadd.f32 %v1190, %v1109
            %v1192 = vadd.f32 %v1191, %v1110
            %v1193 = vadd.f32 %v1192, %v1111
            %v1194 = vadd.f32 %v1193, %v1112
            %v1195 = vadd.f32 %v1194, %v1113
            %v1196 = vadd.f32 %v1195, %v1114
            %v1197 = vadd.f32 %v1196, %v1115
            %v1198 = vadd.f32 %v1197, %v1116
            %v1199 = vadd.f32 %v1198, %v1117
            %v1200 = vadd.f32 %v1199, %v1118
            %v1201 = vadd.f32 %v1200, %v1119
            %v1202 = vadd.f32 %v1201, %v1120
            %v1203 = vadd.f32 %v1202, %v1121
            %v1204 = vadd.f32 %v1203, %v1122
            %v1205 = vadd.f32 %v1204, %v1123
            %v1206 = vadd.f32 %v1205, %v1124
            %v1207 = vadd.f32 %v1206, %v1125
            %v1208 = vadd.f32 %v1207, %v1126
            %v1209 = vadd.f32 %v1208, %v1127
            %v1210 = vadd.f32 %v1209, %v1128
            %v1211 = vadd.f32 %v1210, %v1129
            %v1212 = vadd.f32 %v1211, %v1130
            %v1213 = vadd.f32 %v1212, %v1131
            %v1214 = vadd.f32 %v1213, %v1132
            %v1215 = vadd.f32 %v1214, %v1133
            %v1216 = vadd.f32 %v1215, %v1134
            %v1217 = vadd.f32 %v1216, %v1135
            %v1218 = vadd.f32 %v1217, %v1136
            %v1219 = vadd.f32 %v1218, %v1137
            %v1220 = vadd.f32 %v1219, %v1138
            %v1221 = vstv %s98
            %v1222 = vmul.f32 %v1221, %v1220
            %v1223 = vadd.f32 %v1143, %v1222
            %1224 = vst [vmem:[#allocation7] sm:$0xff] %v1223
          $region92: #{tpu_custom_call.1} parent=87 // pred_fallthru
            _
          %p1225 = scmp.gt.s32.totalorder %s97, 0
          // Predicated region
          $region93: #{tpu_custom_call.1} parent=87 // pred_check
            %p1226 = pneg %p1225
          $region94: #{tpu_custom_call.1} parent=87 // pred_check_branch
            %1228 = sbr.rel (%p1226) target = $region96
          $region95: #{tpu_custom_call.1} parent=87 // pred_region
            %v1229 = vlaneseq
            %v1230 = vshrl.u32 %v1229, 7
            %v1231 = vadd.s32 %v1230, 8
            %v1232 = vadd.s32 %v1230, 16
            %v1233 = vadd.s32 %v1230, 24
            %v1234 = vadd.s32 %v1230, 32
            %v1235 = vadd.s32 %v1230, 40
            %v1236 = vadd.s32 %v1230, 48
            %v1237 = vadd.s32 %v1230, 56
            %v1238 = vadd.s32 %v1230, 64
            %v1239 = vadd.s32 %v1230, 72
            %v1240 = vadd.s32 %v1230, 80
            %v1241 = vadd.s32 %v1230, 88
            %v1242 = vadd.s32 %v1230, 96
            %v1243 = vadd.s32 %v1230, 104
            %v1244 = vadd.s32 %v1230, 112
            %v1245 = vadd.s32 %v1230, 120
            %v1246 = vadd.s32 %v1230, 128
            %v1247 = vadd.s32 %v1230, 136
            %v1248 = vadd.s32 %v1230, 144
            %v1249 = vadd.s32 %v1230, 152
            %v1250 = vadd.s32 %v1230, 160
            %v1251 = vadd.s32 %v1230, 168
            %v1252 = vadd.s32 %v1230, 176
            %v1253 = vadd.s32 %v1230, 184
            %v1254 = vadd.s32 %v1230, 192
            %v1255 = vadd.s32 %v1230, 200
            %v1256 = vadd.s32 %v1230, 208
            %v1257 = vadd.s32 %v1230, 216
            %v1258 = vadd.s32 %v1230, 224
            %v1259 = vadd.s32 %v1230, 232
            %v1260 = vadd.s32 %v1230, 240
            %v1261 = vadd.s32 %v1230, 248
            %v1262 = vadd.s32 %v1230, 256
            %v1263 = vadd.s32 %v1230, 264
            %v1264 = vadd.s32 %v1230, 272
            %v1265 = vadd.s32 %v1230, 280
            %v1266 = vadd.s32 %v1230, 288
            %v1267 = vadd.s32 %v1230, 296
            %v1268 = vadd.s32 %v1230, 304
            %v1269 = vadd.s32 %v1230, 312
            %v1270 = vadd.s32 %v1230, 320
            %v1271 = vadd.s32 %v1230, 328
            %v1272 = vadd.s32 %v1230, 336
            %v1273 = vadd.s32 %v1230, 344
            %v1274 = vadd.s32 %v1230, 352
            %v1275 = vadd.s32 %v1230, 360
            %v1276 = vadd.s32 %v1230, 368
            %v1277 = vadd.s32 %v1230, 376
            %v1278 = vadd.s32 %v1230, 384
            %v1279 = vadd.s32 %v1230, 392
            %v1280 = vadd.s32 %v1230, 400
            %v1281 = vadd.s32 %v1230, 408
            %v1282 = vadd.s32 %v1230, 416
            %v1283 = vadd.s32 %v1230, 424
            %v1284 = vadd.s32 %v1230, 432
            %v1285 = vadd.s32 %v1230, 440
            %v1286 = vadd.s32 %v1230, 448
            %v1287 = vadd.s32 %v1230, 456
            %v1288 = vadd.s32 %v1230, 464
            %v1289 = vadd.s32 %v1230, 472
            %v1290 = vadd.s32 %v1230, 480
            %v1291 = vadd.s32 %v1230, 488
            %v1292 = vadd.s32 %v1230, 496
            %v1293 = vadd.s32 %v1230, 504
            %v1294 = vadd.s32 %v1230, 512
            %v1295 = vadd.s32 %v1230, 520
            %v1296 = vadd.s32 %v1230, 528
            %v1297 = vadd.s32 %v1230, 536
            %v1298 = vadd.s32 %v1230, 544
            %v1299 = vadd.s32 %v1230, 552
            %v1300 = vadd.s32 %v1230, 560
            %v1301 = vadd.s32 %v1230, 568
            %v1302 = vadd.s32 %v1230, 576
            %v1303 = vadd.s32 %v1230, 584
            %v1304 = vadd.s32 %v1230, 592
            %v1305 = vadd.s32 %v1230, 600
            %v1306 = vadd.s32 %v1230, 608
            %v1307 = vadd.s32 %v1230, 616
            %v1308 = vstv %s97
            %vm1309 = vcmp.ge.s32.totalorder %v1230, %v1308
            %vm1310 = vcmp.ge.s32.totalorder %v1231, %v1308
            %vm1311 = vcmp.ge.s32.totalorder %v1232, %v1308
            %vm1312 = vcmp.ge.s32.totalorder %v1233, %v1308
            %vm1313 = vcmp.ge.s32.totalorder %v1234, %v1308
            %vm1314 = vcmp.ge.s32.totalorder %v1235, %v1308
            %vm1315 = vcmp.ge.s32.totalorder %v1236, %v1308
            %vm1316 = vcmp.ge.s32.totalorder %v1237, %v1308
            %vm1317 = vcmp.ge.s32.totalorder %v1238, %v1308
            %vm1318 = vcmp.ge.s32.totalorder %v1239, %v1308
            %vm1319 = vcmp.ge.s32.totalorder %v1240, %v1308
            %vm1320 = vcmp.ge.s32.totalorder %v1241, %v1308
            %vm1321 = vcmp.ge.s32.totalorder %v1242, %v1308
            %vm1322 = vcmp.ge.s32.totalorder %v1243, %v1308
            %vm1323 = vcmp.ge.s32.totalorder %v1244, %v1308
            %vm1324 = vcmp.ge.s32.totalorder %v1245, %v1308
            %vm1325 = vcmp.ge.s32.totalorder %v1246, %v1308
            %vm1326 = vcmp.ge.s32.totalorder %v1247, %v1308
            %vm1327 = vcmp.ge.s32.totalorder %v1248, %v1308
            %vm1328 = vcmp.ge.s32.totalorder %v1249, %v1308
            %vm1329 = vcmp.ge.s32.totalorder %v1250, %v1308
            %vm1330 = vcmp.ge.s32.totalorder %v1251, %v1308
            %vm1331 = vcmp.ge.s32.totalorder %v1252, %v1308
            %vm1332 = vcmp.ge.s32.totalorder %v1253, %v1308
            %vm1333 = vcmp.ge.s32.totalorder %v1254, %v1308
            %vm1334 = vcmp.ge.s32.totalorder %v1255, %v1308
            %vm1335 = vcmp.ge.s32.totalorder %v1256, %v1308
            %vm1336 = vcmp.ge.s32.totalorder %v1257, %v1308
            %vm1337 = vcmp.ge.s32.totalorder %v1258, %v1308
            %vm1338 = vcmp.ge.s32.totalorder %v1259, %v1308
            %vm1339 = vcmp.ge.s32.totalorder %v1260, %v1308
            %vm1340 = vcmp.ge.s32.totalorder %v1261, %v1308
            %vm1341 = vcmp.ge.s32.totalorder %v1262, %v1308
            %vm1342 = vcmp.ge.s32.totalorder %v1263, %v1308
            %vm1343 = vcmp.ge.s32.totalorder %v1264, %v1308
            %vm1344 = vcmp.ge.s32.totalorder %v1265, %v1308
            %vm1345 = vcmp.ge.s32.totalorder %v1266, %v1308
            %vm1346 = vcmp.ge.s32.totalorder %v1267, %v1308
            %vm1347 = vcmp.ge.s32.totalorder %v1268, %v1308
            %vm1348 = vcmp.ge.s32.totalorder %v1269, %v1308
            %vm1349 = vcmp.ge.s32.totalorder %v1270, %v1308
            %vm1350 = vcmp.ge.s32.totalorder %v1271, %v1308
            %vm1351 = vcmp.ge.s32.totalorder %v1272, %v1308
            %vm1352 = vcmp.ge.s32.totalorder %v1273, %v1308
            %vm1353 = vcmp.ge.s32.totalorder %v1274, %v1308
            %vm1354 = vcmp.ge.s32.totalorder %v1275, %v1308
            %vm1355 = vcmp.ge.s32.totalorder %v1276, %v1308
            %vm1356 = vcmp.ge.s32.totalorder %v1277, %v1308
            %vm1357 = vcmp.ge.s32.totalorder %v1278, %v1308
            %vm1358 = vcmp.ge.s32.totalorder %v1279, %v1308
            %vm1359 = vcmp.ge.s32.totalorder %v1280, %v1308
            %vm1360 = vcmp.ge.s32.totalorder %v1281, %v1308
            %vm1361 = vcmp.ge.s32.totalorder %v1282, %v1308
            %vm1362 = vcmp.ge.s32.totalorder %v1283, %v1308
            %vm1363 = vcmp.ge.s32.totalorder %v1284, %v1308
            %vm1364 = vcmp.ge.s32.totalorder %v1285, %v1308
            %vm1365 = vcmp.ge.s32.totalorder %v1286, %v1308
            %vm1366 = vcmp.ge.s32.totalorder %v1287, %v1308
            %vm1367 = vcmp.ge.s32.totalorder %v1288, %v1308
            %vm1368 = vcmp.ge.s32.totalorder %v1289, %v1308
            %vm1369 = vcmp.ge.s32.totalorder %v1290, %v1308
            %vm1370 = vcmp.ge.s32.totalorder %v1291, %v1308
            %vm1371 = vcmp.ge.s32.totalorder %v1292, %v1308
            %vm1372 = vcmp.ge.s32.totalorder %v1293, %v1308
            %vm1373 = vcmp.ge.s32.totalorder %v1294, %v1308
            %vm1374 = vcmp.ge.s32.totalorder %v1295, %v1308
            %vm1375 = vcmp.ge.s32.totalorder %v1296, %v1308
            %vm1376 = vcmp.ge.s32.totalorder %v1297, %v1308
            %vm1377 = vcmp.ge.s32.totalorder %v1298, %v1308
            %vm1378 = vcmp.ge.s32.totalorder %v1299, %v1308
            %vm1379 = vcmp.ge.s32.totalorder %v1300, %v1308
            %vm1380 = vcmp.ge.s32.totalorder %v1301, %v1308
            %vm1381 = vcmp.ge.s32.totalorder %v1302, %v1308
            %vm1382 = vcmp.ge.s32.totalorder %v1303, %v1308
            %vm1383 = vcmp.ge.s32.totalorder %v1304, %v1308
            %vm1384 = vcmp.ge.s32.totalorder %v1305, %v1308
            %vm1385 = vcmp.ge.s32.totalorder %v1306, %v1308
            %vm1386 = vcmp.ge.s32.totalorder %v1307, %v1308
            %v1387 = vsel %vm1309, %v1061, 0.0
            %v1388 = vsel %vm1310, %v1062, 0.0
            %v1389 = vsel %vm1311, %v1063, 0.0
            %v1390 = vsel %vm1312, %v1064, 0.0
            %v1391 = vsel %vm1313, %v1065, 0.0
            %v1392 = vsel %vm1314, %v1066, 0.0
            %v1393 = vsel %vm1315, %v1067, 0.0
            %v1394 = vsel %vm1316, %v1068, 0.0
            %v1395 = vsel %vm1317, %v1069, 0.0
            %v1396 = vsel %vm1318, %v1070, 0.0
            %v1397 = vsel %vm1319, %v1071, 0.0
            %v1398 = vsel %vm1320, %v1072, 0.0
            %v1399 = vsel %vm1321, %v1073, 0.0
            %v1400 = vsel %vm1322, %v1074, 0.0
            %v1401 = vsel %vm1323, %v1075, 0.0
            %v1402 = vsel %vm1324, %v1076, 0.0
            %v1403 = vsel %vm1325, %v1077, 0.0
            %v1404 = vsel %vm1326, %v1078, 0.0
            %v1405 = vsel %vm1327, %v1079, 0.0
            %v1406 = vsel %vm1328, %v1080, 0.0
            %v1407 = vsel %vm1329, %v1081, 0.0
            %v1408 = vsel %vm1330, %v1082, 0.0
            %v1409 = vsel %vm1331, %v1083, 0.0
            %v1410 = vsel %vm1332, %v1084, 0.0
            %v1411 = vsel %vm1333, %v1085, 0.0
            %v1412 = vsel %vm1334, %v1086, 0.0
            %v1413 = vsel %vm1335, %v1087, 0.0
            %v1414 = vsel %vm1336, %v1088, 0.0
            %v1415 = vsel %vm1337, %v1089, 0.0
            %v1416 = vsel %vm1338, %v1090, 0.0
            %v1417 = vsel %vm1339, %v1091, 0.0
            %v1418 = vsel %vm1340, %v1092, 0.0
            %v1419 = vsel %vm1341, %v1093, 0.0
            %v1420 = vsel %vm1342, %v1094, 0.0
            %v1421 = vsel %vm1343, %v1095, 0.0
            %v1422 = vsel %vm1344, %v1096, 0.0
            %v1423 = vsel %vm1345, %v1097, 0.0
            %v1424 = vsel %vm1346, %v1098, 0.0
            %v1425 = vsel %vm1347, %v1099, 0.0
            %v1426 = vsel %vm1348, %v1100, 0.0
            %v1427 = vsel %vm1349, %v1101, 0.0
            %v1428 = vsel %vm1350, %v1102, 0.0
            %v1429 = vsel %vm1351, %v1103, 0.0
            %v1430 = vsel %vm1352, %v1104, 0.0
            %v1431 = vsel %vm1353, %v1105, 0.0
            %v1432 = vsel %vm1354, %v1106, 0.0
            %v1433 = vsel %vm1355, %v1107, 0.0
            %v1434 = vsel %vm1356, %v1108, 0.0
            %v1435 = vsel %vm1357, %v1109, 0.0
            %v1436 = vsel %vm1358, %v1110, 0.0
            %v1437 = vsel %vm1359, %v1111, 0.0
            %v1438 = vsel %vm1360, %v1112, 0.0
            %v1439 = vsel %vm1361, %v1113, 0.0
            %v1440 = vsel %vm1362, %v1114, 0.0
            %v1441 = vsel %vm1363, %v1115, 0.0
            %v1442 = vsel %vm1364, %v1116, 0.0
            %v1443 = vsel %vm1365, %v1117, 0.0
            %v1444 = vsel %vm1366, %v1118, 0.0
            %v1445 = vsel %vm1367, %v1119, 0.0
            %v1446 = vsel %vm1368, %v1120, 0.0
            %v1447 = vsel %vm1369, %v1121, 0.0
            %v1448 = vsel %vm1370, %v1122, 0.0
            %v1449 = vsel %vm1371, %v1123, 0.0
            %v1450 = vsel %vm1372, %v1124, 0.0
            %v1451 = vsel %vm1373, %v1125, 0.0
            %v1452 = vsel %vm1374, %v1126, 0.0
            %v1453 = vsel %vm1375, %v1127, 0.0
            %v1454 = vsel %vm1376, %v1128, 0.0
            %v1455 = vsel %vm1377, %v1129, 0.0
            %v1456 = vsel %vm1378, %v1130, 0.0
            %v1457 = vsel %vm1379, %v1131, 0.0
            %v1458 = vsel %vm1380, %v1132, 0.0
            %v1459 = vsel %vm1381, %v1133, 0.0
            %v1460 = vsel %vm1382, %v1134, 0.0
            %v1461 = vsel %vm1383, %v1135, 0.0
            %v1462 = vsel %vm1384, %v1136, 0.0
            %v1463 = vsel %vm1385, %v1137, 0.0
            %v1464 = vsel %vm1386, %v1138, 0.0
            %v1465 = vld [vmem:[#allocation7] sm:$0xff]
            %v1466 = vadd.f32 %v1387, %v1388
            %v1467 = vadd.f32 %v1466, %v1389
            %v1468 = vadd.f32 %v1467, %v1390
            %v1469 = vadd.f32 %v1468, %v1391
            %v1470 = vadd.f32 %v1469, %v1392
            %v1471 = vadd.f32 %v1470, %v1393
            %v1472 = vadd.f32 %v1471, %v1394
            %v1473 = vadd.f32 %v1472, %v1395
            %v1474 = vadd.f32 %v1473, %v1396
            %v1475 = vadd.f32 %v1474, %v1397
            %v1476 = vadd.f32 %v1475, %v1398
            %v1477 = vadd.f32 %v1476, %v1399
            %v1478 = vadd.f32 %v1477, %v1400
            %v1479 = vadd.f32 %v1478, %v1401
            %v1480 = vadd.f32 %v1479, %v1402
            %v1481 = vadd.f32 %v1480, %v1403
            %v1482 = vadd.f32 %v1481, %v1404
            %v1483 = vadd.f32 %v1482, %v1405
            %v1484 = vadd.f32 %v1483, %v1406
            %v1485 = vadd.f32 %v1484, %v1407
            %v1486 = vadd.f32 %v1485, %v1408
            %v1487 = vadd.f32 %v1486, %v1409
            %v1488 = vadd.f32 %v1487, %v1410
            %v1489 = vadd.f32 %v1488, %v1411
            %v1490 = vadd.f32 %v1489, %v1412
            %v1491 = vadd.f32 %v1490, %v1413
            %v1492 = vadd.f32 %v1491, %v1414
            %v1493 = vadd.f32 %v1492, %v1415
            %v1494 = vadd.f32 %v1493, %v1416
            %v1495 = vadd.f32 %v1494, %v1417
            %v1496 = vadd.f32 %v1495, %v1418
            %v1497 = vadd.f32 %v1496, %v1419
            %v1498 = vadd.f32 %v1497, %v1420
            %v1499 = vadd.f32 %v1498, %v1421
            %v1500 = vadd.f32 %v1499, %v1422
            %v1501 = vadd.f32 %v1500, %v1423
            %v1502 = vadd.f32 %v1501, %v1424
            %v1503 = vadd.f32 %v1502, %v1425
            %v1504 = vadd.f32 %v1503, %v1426
            %v1505 = vadd.f32 %v1504, %v1427
            %v1506 = vadd.f32 %v1505, %v1428
            %v1507 = vadd.f32 %v1506, %v1429
            %v1508 = vadd.f32 %v1507, %v1430
            %v1509 = vadd.f32 %v1508, %v1431
            %v1510 = vadd.f32 %v1509, %v1432
            %v1511 = vadd.f32 %v1510, %v1433
            %v1512 = vadd.f32 %v1511, %v1434
            %v1513 = vadd.f32 %v1512, %v1435
            %v1514 = vadd.f32 %v1513, %v1436
            %v1515 = vadd.f32 %v1514, %v1437
            %v1516 = vadd.f32 %v1515, %v1438
            %v1517 = vadd.f32 %v1516, %v1439
            %v1518 = vadd.f32 %v1517, %v1440
            %v1519 = vadd.f32 %v1518, %v1441
            %v1520 = vadd.f32 %v1519, %v1442
            %v1521 = vadd.f32 %v1520, %v1443
            %v1522 = vadd.f32 %v1521, %v1444
            %v1523 = vadd.f32 %v1522, %v1445
            %v1524 = vadd.f32 %v1523, %v1446
            %v1525 = vadd.f32 %v1524, %v1447
            %v1526 = vadd.f32 %v1525, %v1448
            %v1527 = vadd.f32 %v1526, %v1449
            %v1528 = vadd.f32 %v1527, %v1450
            %v1529 = vadd.f32 %v1528, %v1451
            %v1530 = vadd.f32 %v1529, %v1452
            %v1531 = vadd.f32 %v1530, %v1453
            %v1532 = vadd.f32 %v1531, %v1454
            %v1533 = vadd.f32 %v1532, %v1455
            %v1534 = vadd.f32 %v1533, %v1456
            %v1535 = vadd.f32 %v1534, %v1457
            %v1536 = vadd.f32 %v1535, %v1458
            %v1537 = vadd.f32 %v1536, %v1459
            %v1538 = vadd.f32 %v1537, %v1460
            %v1539 = vadd.f32 %v1538, %v1461
            %v1540 = vadd.f32 %v1539, %v1462
            %v1541 = vadd.f32 %v1540, %v1463
            %v1542 = vadd.f32 %v1541, %v1464
            %v1543 = vstv %s98
            %v1544 = vmul.f32 %v1543, %v1542
            %v1545 = vadd.f32 %v1465, %v1544
            %1546 = vst [vmem:[#allocation7] sm:$0xff] %v1545
          $region96: #{tpu_custom_call.1} parent=87 // pred_fallthru
            _
        $region88: #{tpu_custom_call.1} parent=11 // pred_fallthru
          _
        %p1547 = scmp.eq.s32.totalorder %s52, 2
        // Predicated region
        $region97: #{tpu_custom_call.1} parent=11 // pred_check
          %p1548 = pneg %p1547
        $region98: #{tpu_custom_call.1} parent=11 // pred_check_branch
          %1550 = sbr.rel (%p1548) target = $region100
        $region99: #{tpu_custom_call.1} parent=11 // pred_region
          %v1551 = vld [vmem:[#allocation6] sm:$0xff]
          %1552 = vadd.xlane.f32.xlu0 %v1551
          %v1553 = vpop.xlane.xlu0 %1552
          %v1554 = vrot.slane %v1553, 4
          %v1555 = vadd.f32 %v1553, %v1554
          %v1556 = vrot.slane %v1555, 2
          %v1557 = vadd.f32 %v1555, %v1556
          %v1558 = vrot.slane %v1557, 1
          %v1559 = vadd.f32 %v1557, %v1558
          %s1560 = vtos %v1559
          %v1561 = vstv %s1560
          %v1562 = vadd.f32 %v1561, 0.0
          %1563 = vst [vmem:[#allocation15] sm:$0xff] %v1562
          %v1564 = vld [vmem:[#allocation7] sm:$0xff]
          %1565 = vadd.xlane.f32.xlu0 %v1564
          %v1566 = vpop.xlane.xlu0 %1565
          %v1567 = vrot.slane %v1566, 4
          %v1568 = vadd.f32 %v1566, %v1567
          %v1569 = vrot.slane %v1568, 2
          %v1570 = vadd.f32 %v1568, %v1569
          %v1571 = vrot.slane %v1570, 1
          %v1572 = vadd.f32 %v1570, %v1571
          %s1573 = vtos %v1572
          %v1574 = vstv %s1573
          %v1575 = vadd.f32 %v1574, 0.0
          %1576 = vst [vmem:[#allocation17] sm:$0xff] %v1575
        $region100: #{tpu_custom_call.1} parent=11 // pred_fallthru
          _
        // Predicated region
        $region101: #{tpu_custom_call.1} parent=11 // pred_check
          %p1577 = pneg %p62
        $region102: #{tpu_custom_call.1} parent=11 // pred_check_branch
          %1579 = sbr.rel (%p1577) target = $region104
        $region103: #{tpu_custom_call.1} parent=11 // pred_region
          %1581 = vsyncadd [#allocation16], 0
          %s1583 = sshll.u32 [#allocation15], 4
          %s1584 = int_to_ptr.vmem [resolvable:$true] %s1583
          %s1585 = sshll.u32 %s9, 4
          %s1586 = int_to_ptr.hbm [resolvable:$true] %s1585
          %1588 = dma.vmem_to_hbm [thread:$0]  %s1584, 128, %s1586, [#allocation16]
        $region104: #{tpu_custom_call.1} parent=11 // pred_fallthru
          _
        // Predicated region
        $region105: #{tpu_custom_call.1} parent=11 // pred_check
          %p1589 = pneg %p76
        $region106: #{tpu_custom_call.1} parent=11 // pred_check_branch
          %1591 = sbr.rel (%p1589) target = $region108
        $region107: #{tpu_custom_call.1} parent=11 // pred_region
          %1593 = vsyncadd [#allocation18], 0
          %s1595 = sshll.u32 [#allocation17], 4
          %s1596 = int_to_ptr.vmem [resolvable:$true] %s1595
          %s1597 = sshll.u32 %s10, 4
          %s1598 = int_to_ptr.hbm [resolvable:$true] %s1597
          %1600 = dma.vmem_to_hbm [thread:$0]  %s1596, 128, %s1598, [#allocation18]
        $region108: #{tpu_custom_call.1} parent=11 // pred_fallthru
          _
        // Predicated region
        $region109: #{tpu_custom_call.1} parent=11 // pred_check
          %p1601 = pneg %p62
        $region110: #{tpu_custom_call.1} parent=11 // pred_check_branch
          %1603 = sbr.rel (%p1601) target = $region112
        $region111: #{tpu_custom_call.1} parent=11 // pred_region
          %1605 = dma.done [#allocation16], 128
        $region112: #{tpu_custom_call.1} parent=11 // pred_fallthru
          _
        // Predicated region
        $region113: #{tpu_custom_call.1} parent=11 // pred_check
          %p1606 = pneg %p76
        $region114: #{tpu_custom_call.1} parent=11 // pred_check_branch
          %1608 = sbr.rel (%p1606) target = $region116
        $region115: #{tpu_custom_call.1} parent=11 // pred_region
          %1610 = dma.done [#allocation18], 128
        $region116: #{tpu_custom_call.1} parent=11 // pred_fallthru
          _
      $region12: #{tpu_custom_call.1} parent=5 // pred_fallthru
        _
      %p1611 = scmp.le.s32.totalorder 1, %s52
      // Predicated region
      $region117: #{tpu_custom_call.1} parent=5 // pred_check
        %p1612 = pneg %p1611
      $region118: #{tpu_custom_call.1} parent=5 // pred_check_branch
        %1614 = sbr.rel (%p1612) target = $region120
      $region119: #{tpu_custom_call.1} parent=5 // pred_region
        %s1615 = ssub.s32 %s52, 1
      $region120: #{tpu_custom_call.1} parent=5 // pred_fallthru
        _
    $region6: #{tpu_custom_call.1} parent=1 // loop_footer
      %s56 = sadd.s32 1, %s52
    $region7: #{tpu_custom_call.1} parent=1 // loop_footer_branch
      %51 = sbr.rel target = $region3
    $region8: #{tpu_custom_call.1} parent=1 // loop_exit
      _
    %1616 = vsyncpa [#allocation16], 1
    %s1617 = scalar_lea.sflag [#allocation16], 1
    %1618 = vsyncpa %s1617, 1
    %1619 = vsyncpa [#allocation18], 1
  %1620 = vsyncmov [#allocation3]
  %s1621 = vpop.sfrf %1620
  %p1622 = scmp.eq.s32.totalorder %s1621, 0
  %p1623 = pneg %p1622
  %1625 = shalt.err (%p1623)
  %s1626 = scalar_lea.sflag [#allocation3], 1
  %1627 = vsyncmov %s1626
  %s1628 = vpop.sfrf %1627
  %p1629 = scmp.eq.s32.totalorder %s1628, 0
  %p1630 = pneg %p1629
  %1632 = shalt.err (%p1630)
  %1633 = vsyncmov [#allocation5]
  %s1634 = vpop.sfrf %1633
  %p1635 = scmp.eq.s32.totalorder %s1634, 0
  %p1636 = pneg %p1635
  %1638 = shalt.err (%p1636)
  %s1639 = scalar_lea.sflag [#allocation5], 1
  %1640 = vsyncmov %s1639
  %s1641 = vpop.sfrf %1640
  %p1642 = scmp.eq.s32.totalorder %s1641, 0
  %p1643 = pneg %p1642
  %1645 = shalt.err (%p1643)

</llo_original>
